<compile_context>
chip_gen: v7x
topology: tpu7x:2x2x1
jax: 0.10.0
libtpu: 0.0.40
codegen_flags: <defaults>
</compile_context>

<pallas_src>
import functools

import jax
import jax.numpy as jnp
import numpy as np
from jax.experimental import pallas as pl
from jax.experimental.pallas import tpu as pltpu


# ----------------------------------------------------------------------------
# Pallas kernel: full GGNN forward for one tile of G packed graphs.
# ----------------------------------------------------------------------------
def _ggnn_kernel(n_steps, n_edge_types, G, N, D,
                 h0_ref, ann_ref, acat_ref, c3_ref,
                 sel_ref, mask_ref, vall_ref, w2h_ref, wth_ref,
                 wg1a_ref, wg1b_ref, bg1_ref, poolw_ref, wg2_ref,
                 out_ref):
    f32, bf16 = jnp.float32, jnp.bfloat16
    K = 2 * n_edge_types          # edge types x directions (in | out)
    R = G * N                     # packed node rows per tile

    def mm(x, w):
        return jnp.dot(x, w, preferred_element_type=f32)

    # ---- loop-invariant loads (all hoisted out of the step loop) ----
    h = h0_ref[0]                 # (R, D)    f32 carried node state
    ann = ann_ref[0]              # (R, AD)   bf16
    a_cat = acat_ref[0]           # (R, K*N)  bf16 compact per-graph adjacency
    c3 = c3_ref[0]                # (R, 3D)   f32  step-invariant [r|z|t] bias term
    mask = mask_ref[...]          # (R, R)    bf16 0/1 block-diagonal (per-graph) mask
    w2_h = w2h_ref[...]           # (D, 2D)   bf16 h-contribution to [r|z]
    wt_h = wth_ref[...]           # (D, D)    bf16 (r*h)-contribution to t
    wg1a = wg1a_ref[...]          # (D, D)    bf16 readout (h part)
    wg1b = wg1b_ref[...]          # (AD, D)   bf16 readout (annotation part)
    bg1 = bg1_ref[...]            # (1, D)    f32
    poolw = poolw_ref[...]        # (G, R)    bf16 per-graph pooling with w_s folded in
    wg2 = wg2_ref[...]            # (1, D)    f32
    v_all = [vall_ref[k] for k in range(K)]   # each (D, 3D) bf16, edge-FC (x) gate fused

    # ---- once per tile: expand compact adjacency into the sublane-stacked
    #      block-diagonal message operator A_all (K*R, R); step-invariant ----
    blocks = [(mm(a_cat, sel_ref[k]).astype(bf16) * mask) for k in range(K)]
    a_all = jnp.concatenate(blocks, axis=0)            # (K*R, R) bf16

    # ---- GRU message-passing propagation (fori_loop bounds live ranges) ----
    def step(_, h):
        hb = h.astype(bf16)
        m_all = mm(a_all, hb)                          # (K*R, D) f32 — ONE message matmul
        pre3 = c3                                      # (R, 3D)  [r|z|t] pre-activations
        for k in range(K):
            mk = m_all[k * R:(k + 1) * R].astype(bf16)  # sublane slice (layout-cheap)
            pre3 = pre3 + mm(mk, v_all[k])
        rz = jax.nn.sigmoid(pre3[:, :2 * D] + mm(hb, w2_h))    # (R, 2D)
        r = rz[:, :D]
        z = rz[:, D:]
        h_hat = jnp.tanh(pre3[:, 2 * D:] + mm((r * h).astype(bf16), wt_h))
        return (1.0 - z) * h + z * h_hat

    h = jax.lax.fori_loop(0, n_steps, step, h)

    # ---- readout: tanh(Linear([h|ann])) then fused w_s / w_g2 score ----
    g1 = jnp.tanh(mm(h.astype(bf16), wg1a) + mm(ann, wg1b) + bg1)   # (R, D) f32
    s = mm(poolw, g1.astype(bf16))                                  # (G, D) f32
    # (G, 1) score block per tile; scalar constant is added in the wrapper.
    # (Output is lane-narrow; negligible at these sizes.)
    out_ref[0] = jnp.sum(s * wg2, axis=1, keepdims=True)


# ----------------------------------------------------------------------------
# Wrapper: layout / weight-fusion plumbing (plain JAX) + pallas_call.
# ----------------------------------------------------------------------------
def ggnn_forward(prop_state, annotation, A, params, *, n_steps, n_edge_types,
                 graphs_per_tile=None):
    f32, bf16 = jnp.float32, jnp.bfloat16
    B, N, D = prop_state.shape
    AD = annotation.shape[-1]
    E = n_edge_types
    K = 2 * E

    # ---- tile sizing: target ~256 packed rows (v6e/v7x 256-wide MXU), but
    #      keep >=2 grid tiles for v7x's two TCs when that doesn't starve rows.
    if graphs_per_tile is None:
        target_rows = 256
        G = max(1, min(B, max(1, target_rows // max(N, 1))))
        if -(-B // G) == 1 and B > 1 and (-(-B // 2)) * N >= 128:
            G = -(-B // 2)
    else:
        G = int(graphs_per_tile)
    T = -(-B // G)                 # number of grid steps (batch tiles)
    Bp = T * G
    R = G * N

    def pad_b(x):
        if Bp == B:
            return x
        return jnp.pad(x, ((0, Bp - B),) + ((0, 0),) * (x.ndim - 1))

    prop_p = pad_b(prop_state).astype(f32)
    ann_p = pad_b(annotation)
    A_p = pad_b(A).astype(f32)

    # ---- compact adjacency (no GxG block-diagonal inflation in HBM) ----
    # Reference column layout is node-major / edge-minor (j = n*E + e).
    A_in_pe = A_p[:, :, :N * E].reshape(Bp, N, N, E).transpose(0, 3, 1, 2)   # (Bp,E,N,N)
    A_out_pe = A_p[:, :, N * E:].reshape(Bp, N, N, E).transpose(0, 3, 1, 2)
    A_ke = jnp.concatenate([A_in_pe, A_out_pe], axis=1)                      # (Bp,K,N,N)
    # a_cat[t, g*N+i, k*N+j] = A_ke[t*G+g, k, i, j]
    a_cat = (A_ke.transpose(0, 2, 1, 3)
             .reshape(Bp, N, K * N)
             .reshape(T, R, K * N)
             .astype(bf16))

    # Host-built constants for the in-kernel block-diag expansion.
    sel_np = np.zeros((K, K * N, R), np.float32)     # sel[k, k*N+(c%N), c] = 1
    cmod = np.arange(R) % N
    for k in range(K):
        sel_np[k, k * N + cmod, np.arange(R)] = 1.0
    sel = jnp.asarray(sel_np, dtype=bf16)
    rblk = np.arange(R) // N
    mask = jnp.asarray((rblk[:, None] == rblk[None, :]).astype(np.float32), dtype=bf16)

    # ---- gate weights: stack [r|z|t] and pre-fuse the edge FCs into them ----
    w_r, w_z, w_t = params["w_r"], params["w_z"], params["w_t"]              # (D, 3D) torch
    W3_i = jnp.concatenate([w_r[:, :D].T, w_z[:, :D].T, w_t[:, :D].T], axis=1)          # (D,3D)
    W3_o = jnp.concatenate([w_r[:, D:2 * D].T, w_z[:, D:2 * D].T, w_t[:, D:2 * D].T], axis=1)
    w2_h = jnp.concatenate([w_r[:, 2 * D:].T, w_z[:, 2 * D:].T], axis=1).astype(bf16)   # (D,2D)
    wt_h = w_t[:, 2 * D:].T.astype(bf16)                                                # (D,D)
    b3 = jnp.concatenate([params["b_r"], params["b_z"], params["b_t"]]).reshape(1, 3 * D)

    # V_k = W_edge_k^T @ W3  -> per-step messages feed the gates directly,
    # a_in / a_out are never materialized in the kernel.
    v_list = ([params["w_in"][e].T @ W3_i for e in range(E)]
              + [params["w_out"][e].T @ W3_o for e in range(E)])
    v_all = jnp.stack(v_list).astype(bf16)                                   # (K, D, 3D)

    # Step-invariant bias term c3 = ab_in @ W3_i + ab_out @ W3_o + [b_r|b_z|b_t]
    rs_in = A_in_pe.sum(axis=3)                                              # (Bp, E, N)
    rs_out = A_out_pe.sum(axis=3)
    bin3 = params["b_in"] @ W3_i                                             # (E, 3D)
    bout3 = params["b_out"] @ W3_o
    c3 = (jnp.einsum('ben,ed->bnd', rs_in, bin3)
          + jnp.einsum('ben,ed->bnd', rs_out, bout3)
          + b3).reshape(T, R, 3 * D).astype(f32)

    # ---- readout weights ----
    wg1a = params["w_g1"][:, :D].T.astype(bf16)                              # (D, D)
    wg1b = params["w_g1"][:, D:].T.astype(bf16)                              # (AD, D)
    bg1 = params["b_g1"].reshape(1, D).astype(f32)
    wg2 = params["w_g2"].reshape(1, D).astype(f32)
    eye_g = jnp.eye(G, dtype=f32)
    poolw = jnp.einsum('gh,n->ghn', eye_g,
                       params["w_s"].reshape(N)).reshape(G, R).astype(bf16)  # (G, R)
    const = params["b_s"][0] + params["b_g2"][0] * jnp.sum(params["w_s"])

    h0 = prop_p.reshape(T, R, D)
    ann_t = ann_p.reshape(T, R, AD).astype(bf16)

    data = (h0, ann_t, a_cat, c3)
    consts = (sel, mask, v_all, w2_h, wt_h, wg1a, wg1b, bg1, poolw, wg2)

    def batch_spec(x):
        nd = x.ndim
        return pl.BlockSpec((1,) + x.shape[1:],
                            lambda t, _n=nd: (t,) + (0,) * (_n - 1))

    def const_spec(x):
        nd = x.ndim
        return pl.BlockSpec(x.shape, lambda t, _n=nd: (0,) * _n)

    kernel = functools.partial(_ggnn_kernel, n_steps, E, G, N, D)

    out = pl.pallas_call(
        kernel,
        out_shape=jax.ShapeDtypeStruct((T, G, 1), jnp.float32),
        grid=(T,),
        in_specs=[batch_spec(x) for x in data] + [const_spec(w) for w in consts],
        out_specs=pl.BlockSpec((1, G, 1), lambda t: (t, 0, 0)),
        compiler_params=pltpu.CompilerParams(
            # Batch tiles are independent -> shard across TensorCores (v7x).
            dimension_semantics=("parallel",),
            # Per-tile working set is tiny (adjacency is no longer inflated);
            # 32 MiB fits comfortably even on v7x's 64 MiB physical VMEM.
            vmem_limit_bytes=32 * 1024 * 1024),
    )(*data, *consts)

    return out.reshape(Bp, 1)[:B] + const


# ----------------------------------------------------------------------------
# Pure-JAX reference (mirrors the PyTorch GGNN forward exactly, f32).
# ----------------------------------------------------------------------------
def ggnn_reference(prop_state, annotation, A, params, *, n_steps, n_edge_types):
    B, N, D = prop_state.shape
    AD = annotation.shape[-1]
    E = n_edge_types

    def linear(x, w, b):
        return x @ w.T + b

    h = prop_state
    for _ in range(n_steps):
        flat = h.reshape(-1, D)
        in_states, out_states = [], []
        for e in range(E):
            in_states.append(linear(flat, params["w_in"][e], params["b_in"][e]))
            out_states.append(linear(flat, params["w_out"][e], params["b_out"][e]))
        in_states = jnp.stack(in_states).transpose(1, 0, 2).reshape(B, N * E, D)
        out_states = jnp.stack(out_states).transpose(1, 0, 2).reshape(B, N * E, D)

        A_in = A[:, :, :N * E]
        A_out = A[:, :, N * E:]
        a_in = jnp.einsum("bij,bjd->bid", A_in, in_states)
        a_out = jnp.einsum("bij,bjd->bid", A_out, out_states)

        a = jnp.concatenate([a_in, a_out, h], axis=2).reshape(-1, 3 * D)
        r = jax.nn.sigmoid(linear(a, params["w_r"], params["b_r"])).reshape(B, N, D)
        z = jax.nn.sigmoid(linear(a, params["w_z"], params["b_z"])).reshape(B, N, D)
        joined = jnp.concatenate([a_in, a_out, r * h], axis=2).reshape(-1, 3 * D)
        h_hat = jnp.tanh(linear(joined, params["w_t"], params["b_t"])).reshape(B, N, D)
        h = (1.0 - z) * h + z * h_hat

    join_state = jnp.concatenate([h, annotation], axis=2).reshape(-1, D + AD)
    g = jnp.tanh(linear(join_state, params["w_g1"], params["b_g1"]))
    g = linear(g, params["w_g2"], params["b_g2"])
    return linear(g.reshape(B, N), params["w_s"], params["b_s"])


# ----------------------------------------------------------------------------
# Deterministic parameter init (normal(0, 0.02) weights, zero biases).
# ----------------------------------------------------------------------------
def init_params(key, state_dim, annotation_dim, n_edge_types, n_nodes):
    D, AD, E = state_dim, annotation_dim, n_edge_types
    keys = jax.random.split(key, 10)

    def w(k, shape):
        return 0.02 * jax.random.normal(k, shape, dtype=jnp.float32)

    return {
        "w_in": w(keys[0], (E, D, D)), "b_in": jnp.zeros((E, D), jnp.float32),
        "w_out": w(keys[1], (E, D, D)), "b_out": jnp.zeros((E, D), jnp.float32),
        "w_r": w(keys[2], (D, 3 * D)), "b_r": jnp.zeros((D,), jnp.float32),
        "w_z": w(keys[3], (D, 3 * D)), "b_z": jnp.zeros((D,), jnp.float32),
        "w_t": w(keys[4], (D, 3 * D)), "b_t": jnp.zeros((D,), jnp.float32),
        "w_g1": w(keys[5], (D, D + AD)), "b_g1": jnp.zeros((D,), jnp.float32),
        "w_g2": w(keys[6], (1, D)), "b_g2": jnp.zeros((1,), jnp.float32),
        "w_s": w(keys[7], (1, n_nodes)), "b_s": jnp.zeros((1,), jnp.float32),
    }


if __name__ == "__main__":
    # Small shapes consistent with the module's forward.
    B, D, AD, E, N, STEPS = 2, 32, 16, 2, 8, 3

    key = jax.random.PRNGKey(0)
    k_p, k_a, k_A, k_w = jax.random.split(key, 4)

    prop_state = jax.random.normal(k_p, (B, N, D), dtype=jnp.float32)
    annotation = jax.random.normal(k_a, (B, N, AD), dtype=jnp.float32)
    A = jax.random.normal(k_A, (B, N, 2 * N * E), dtype=jnp.float32)
    params = init_params(k_w, D, AD, E, N)

    out = ggnn_forward(prop_state, annotation, A, params,
                       n_steps=STEPS, n_edge_types=E)
    out = jax.block_until_ready(out)

    ref = jax.block_until_ready(
        ggnn_reference(prop_state, annotation, A, params,
                       n_steps=STEPS, n_edge_types=E))

    # bf16 MXU operands (f32 accumulation) -> bf16-typical tolerance.
    np.testing.assert_allclose(np.asarray(out), np.asarray(ref),
                               rtol=2e-2, atol=2e-3)
    print("KERNEL_OK")
</pallas_src>

<mosaic_0001>
module attributes {stable_mosaic.version = 11 : i64} {
  func.func @_ggnn_kernel(%arg0: i32, %arg1: memref<1x16x32xf32, #tpu.memory_space<vmem>>, %arg2: memref<1x16x16xbf16, #tpu.memory_space<vmem>>, %arg3: memref<1x16x32xbf16, #tpu.memory_space<vmem>>, %arg4: memref<1x16x96xf32, #tpu.memory_space<vmem>>, %arg5: memref<4x32x16xbf16, #tpu.memory_space<vmem>>, %arg6: memref<16x16xbf16, #tpu.memory_space<vmem>>, %arg7: memref<4x32x96xbf16, #tpu.memory_space<vmem>>, %arg8: memref<32x64xbf16, #tpu.memory_space<vmem>>, %arg9: memref<32x32xbf16, #tpu.memory_space<vmem>>, %arg10: memref<32x32xbf16, #tpu.memory_space<vmem>>, %arg11: memref<16x32xbf16, #tpu.memory_space<vmem>>, %arg12: memref<1x32xf32, #tpu.memory_space<vmem>>, %arg13: memref<2x16xbf16, #tpu.memory_space<vmem>>, %arg14: memref<1x32xf32, #tpu.memory_space<vmem>>, %arg15: memref<1x2x1xf32, #tpu.memory_space<vmem>>) attributes {dimension_semantics = [#tpu.dimension_semantics<parallel>], iteration_bounds = array<i64: 1>, scalar_prefetch = 0 : i64, scratch_operands = 0 : i64, tpu.core_type = #tpu.core_type<tc>, window_params = [{transform_indices = @transform_0, window_bounds = array<i64: 1, 16, 32>}, {transform_indices = @transform_1, window_bounds = array<i64: 1, 16, 16>}, {transform_indices = @transform_2, window_bounds = array<i64: 1, 16, 32>}, {transform_indices = @transform_3, window_bounds = array<i64: 1, 16, 96>}, {pipeline_mode = #tpu.pipeline_mode<synchronous>, transform_indices = @transform_4, window_bounds = array<i64: 4, 32, 16>}, {pipeline_mode = #tpu.pipeline_mode<synchronous>, transform_indices = @transform_5, window_bounds = array<i64: 16, 16>}, {pipeline_mode = #tpu.pipeline_mode<synchronous>, transform_indices = @transform_6, window_bounds = array<i64: 4, 32, 96>}, {pipeline_mode = #tpu.pipeline_mode<synchronous>, transform_indices = @transform_7, window_bounds = array<i64: 32, 64>}, {pipeline_mode = #tpu.pipeline_mode<synchronous>, transform_indices = @transform_8, window_bounds = array<i64: 32, 32>}, {pipeline_mode = #tpu.pipeline_mode<synchronous>, transform_indices = @transform_9, window_bounds = array<i64: 32, 32>}, {pipeline_mode = #tpu.pipeline_mode<synchronous>, transform_indices = @transform_10, window_bounds = array<i64: 16, 32>}, {pipeline_mode = #tpu.pipeline_mode<synchronous>, transform_indices = @transform_11, window_bounds = array<i64: 1, 32>}, {pipeline_mode = #tpu.pipeline_mode<synchronous>, transform_indices = @transform_12, window_bounds = array<i64: 2, 16>}, {pipeline_mode = #tpu.pipeline_mode<synchronous>, transform_indices = @transform_13, window_bounds = array<i64: 1, 32>}, {transform_indices = @transform_14, window_bounds = array<i64: 1, 2, 1>}]} {
    %c0 = arith.constant 0 : index
    %c0_0 = arith.constant 0 : index
    %c0_1 = arith.constant 0 : index
    %0 = vector.load %arg1[%c0, %c0_0, %c0_1] : memref<1x16x32xf32, #tpu.memory_space<vmem>>, vector<1x16x32xf32>
    %1 = vector.shape_cast %0 : vector<1x16x32xf32> to vector<16x32xf32>
    %c0_2 = arith.constant 0 : index
    %c0_3 = arith.constant 0 : index
    %c0_4 = arith.constant 0 : index
    %2 = vector.load %arg2[%c0_2, %c0_3, %c0_4] : memref<1x16x16xbf16, #tpu.memory_space<vmem>>, vector<1x16x16xbf16>
    %3 = vector.shape_cast %2 : vector<1x16x16xbf16> to vector<16x16xbf16>
    %c0_5 = arith.constant 0 : index
    %c0_6 = arith.constant 0 : index
    %c0_7 = arith.constant 0 : index
    %4 = vector.load %arg3[%c0_5, %c0_6, %c0_7] : memref<1x16x32xbf16, #tpu.memory_space<vmem>>, vector<1x16x32xbf16>
    %5 = vector.shape_cast %4 : vector<1x16x32xbf16> to vector<16x32xbf16>
    %c0_8 = arith.constant 0 : index
    %c0_9 = arith.constant 0 : index
    %c0_10 = arith.constant 0 : index
    %6 = vector.load %arg4[%c0_8, %c0_9, %c0_10] : memref<1x16x96xf32, #tpu.memory_space<vmem>>, vector<1x16x96xf32>
    %7 = vector.shape_cast %6 : vector<1x16x96xf32> to vector<16x96xf32>
    %c0_11 = arith.constant 0 : index
    %c0_12 = arith.constant 0 : index
    %8 = vector.load %arg6[%c0_11, %c0_12] : memref<16x16xbf16, #tpu.memory_space<vmem>>, vector<16x16xbf16>
    %c0_13 = arith.constant 0 : index
    %c0_14 = arith.constant 0 : index
    %9 = vector.load %arg8[%c0_13, %c0_14] : memref<32x64xbf16, #tpu.memory_space<vmem>>, vector<32x64xbf16>
    %c0_15 = arith.constant 0 : index
    %c0_16 = arith.constant 0 : index
    %10 = vector.load %arg9[%c0_15, %c0_16] : memref<32x32xbf16, #tpu.memory_space<vmem>>, vector<32x32xbf16>
    %c0_17 = arith.constant 0 : index
    %c0_18 = arith.constant 0 : index
    %11 = vector.load %arg10[%c0_17, %c0_18] : memref<32x32xbf16, #tpu.memory_space<vmem>>, vector<32x32xbf16>
    %c0_19 = arith.constant 0 : index
    %c0_20 = arith.constant 0 : index
    %12 = vector.load %arg11[%c0_19, %c0_20] : memref<16x32xbf16, #tpu.memory_space<vmem>>, vector<16x32xbf16>
    %c0_21 = arith.constant 0 : index
    %c0_22 = arith.constant 0 : index
    %13 = vector.load %arg12[%c0_21, %c0_22] : memref<1x32xf32, #tpu.memory_space<vmem>>, vector<1x32xf32>
    %c0_23 = arith.constant 0 : index
    %c0_24 = arith.constant 0 : index
    %14 = vector.load %arg13[%c0_23, %c0_24] : memref<2x16xbf16, #tpu.memory_space<vmem>>, vector<2x16xbf16>
    %c0_25 = arith.constant 0 : index
    %c0_26 = arith.constant 0 : index
    %15 = vector.load %arg14[%c0_25, %c0_26] : memref<1x32xf32, #tpu.memory_space<vmem>>, vector<1x32xf32>
    %c0_27 = arith.constant 0 : index
    %c0_28 = arith.constant 0 : index
    %c0_29 = arith.constant 0 : index
    %16 = vector.load %arg7[%c0_27, %c0_28, %c0_29] : memref<4x32x96xbf16, #tpu.memory_space<vmem>>, vector<1x32x96xbf16>
    %17 = vector.shape_cast %16 : vector<1x32x96xbf16> to vector<32x96xbf16>
    %c1 = arith.constant 1 : index
    %c0_30 = arith.constant 0 : index
    %c0_31 = arith.constant 0 : index
    %18 = vector.load %arg7[%c1, %c0_30, %c0_31] : memref<4x32x96xbf16, #tpu.memory_space<vmem>>, vector<1x32x96xbf16>
    %19 = vector.shape_cast %18 : vector<1x32x96xbf16> to vector<32x96xbf16>
    %c2 = arith.constant 2 : index
    %c0_32 = arith.constant 0 : index
    %c0_33 = arith.constant 0 : index
    %20 = vector.load %arg7[%c2, %c0_32, %c0_33] : memref<4x32x96xbf16, #tpu.memory_space<vmem>>, vector<1x32x96xbf16>
    %21 = vector.shape_cast %20 : vector<1x32x96xbf16> to vector<32x96xbf16>
    %c3 = arith.constant 3 : index
    %c0_34 = arith.constant 0 : index
    %c0_35 = arith.constant 0 : index
    %22 = vector.load %arg7[%c3, %c0_34, %c0_35] : memref<4x32x96xbf16, #tpu.memory_space<vmem>>, vector<1x32x96xbf16>
    %23 = vector.shape_cast %22 : vector<1x32x96xbf16> to vector<32x96xbf16>
    %c0_36 = arith.constant 0 : index
    %c0_37 = arith.constant 0 : index
    %c0_38 = arith.constant 0 : index
    %24 = vector.load %arg5[%c0_36, %c0_37, %c0_38] : memref<4x32x16xbf16, #tpu.memory_space<vmem>>, vector<1x32x16xbf16>
    %25 = vector.shape_cast %24 : vector<1x32x16xbf16> to vector<32x16xbf16>
    %cst = arith.constant dense<0.000000e+00> : vector<16x16xf32>
    %26 = tpu.matmul %5, %25, %cst {dimension_numbers = #tpu.dot_dimension_numbers<[1], [0], [0], [1], [0, 0, 1, 1], [], []>} : vector<16x32xbf16>, vector<32x16xbf16>, vector<16x16xf32> -> vector<16x16xf32>
    %27 = arith.truncf %26 : vector<16x16xf32> to vector<16x16xbf16>
    %28 = arith.mulf %27, %8 : vector<16x16xbf16>
    %c1_39 = arith.constant 1 : index
    %c0_40 = arith.constant 0 : index
    %c0_41 = arith.constant 0 : index
    %29 = vector.load %arg5[%c1_39, %c0_40, %c0_41] : memref<4x32x16xbf16, #tpu.memory_space<vmem>>, vector<1x32x16xbf16>
    %30 = vector.shape_cast %29 : vector<1x32x16xbf16> to vector<32x16xbf16>
    %cst_42 = arith.constant dense<0.000000e+00> : vector<16x16xf32>
    %31 = tpu.matmul %5, %30, %cst_42 {dimension_numbers = #tpu.dot_dimension_numbers<[1], [0], [0], [1], [0, 0, 1, 1], [], []>} : vector<16x32xbf16>, vector<32x16xbf16>, vector<16x16xf32> -> vector<16x16xf32>
    %32 = arith.truncf %31 : vector<16x16xf32> to vector<16x16xbf16>
    %33 = arith.mulf %32, %8 : vector<16x16xbf16>
    %c2_43 = arith.constant 2 : index
    %c0_44 = arith.constant 0 : index
    %c0_45 = arith.constant 0 : index
    %34 = vector.load %arg5[%c2_43, %c0_44, %c0_45] : memref<4x32x16xbf16, #tpu.memory_space<vmem>>, vector<1x32x16xbf16>
    %35 = vector.shape_cast %34 : vector<1x32x16xbf16> to vector<32x16xbf16>
    %cst_46 = arith.constant dense<0.000000e+00> : vector<16x16xf32>
    %36 = tpu.matmul %5, %35, %cst_46 {dimension_numbers = #tpu.dot_dimension_numbers<[1], [0], [0], [1], [0, 0, 1, 1], [], []>} : vector<16x32xbf16>, vector<32x16xbf16>, vector<16x16xf32> -> vector<16x16xf32>
    %37 = arith.truncf %36 : vector<16x16xf32> to vector<16x16xbf16>
    %38 = arith.mulf %37, %8 : vector<16x16xbf16>
    %c3_47 = arith.constant 3 : index
    %c0_48 = arith.constant 0 : index
    %c0_49 = arith.constant 0 : index
    %39 = vector.load %arg5[%c3_47, %c0_48, %c0_49] : memref<4x32x16xbf16, #tpu.memory_space<vmem>>, vector<1x32x16xbf16>
    %40 = vector.shape_cast %39 : vector<1x32x16xbf16> to vector<32x16xbf16>
    %cst_50 = arith.constant dense<0.000000e+00> : vector<16x16xf32>
    %41 = tpu.matmul %5, %40, %cst_50 {dimension_numbers = #tpu.dot_dimension_numbers<[1], [0], [0], [1], [0, 0, 1, 1], [], []>} : vector<16x32xbf16>, vector<32x16xbf16>, vector<16x16xf32> -> vector<16x16xf32>
    %42 = arith.truncf %41 : vector<16x16xf32> to vector<16x16xbf16>
    %43 = arith.mulf %42, %8 : vector<16x16xbf16>
    %44 = tpu.concatenate %28, %33, %38, %43 in 0 : vector<16x16xbf16>, vector<16x16xbf16>, vector<16x16xbf16>, vector<16x16xbf16> -> vector<64x16xbf16>
    %c0_i32 = arith.constant 0 : i32
    %c3_i32 = arith.constant 3 : i32
    %45 = arith.addi %c0_i32, %c3_i32 : i32
    %c1_i32 = arith.constant 1 : i32
    %46 = scf.for %arg16 = %c0_i32 to %45 step %c1_i32 iter_args(%arg17 = %1) -> (vector<16x32xf32>)  : i32 {
      %63 = arith.truncf %arg17 : vector<16x32xf32> to vector<16x32xbf16>
      %cst_58 = arith.constant dense<0.000000e+00> : vector<64x32xf32>
      %64 = tpu.matmul %44, %63, %cst_58 {dimension_numbers = #tpu.dot_dimension_numbers<[1], [0], [0], [1], [0, 0, 1, 1], [], []>} : vector<64x16xbf16>, vector<16x32xbf16>, vector<64x32xf32> -> vector<64x32xf32>
      %65 = vector.extract_strided_slice %64 {offsets = [0, 0], sizes = [16, 32], strides = [1, 1]} : vector<64x32xf32> to vector<16x32xf32>
      %66 = arith.truncf %65 : vector<16x32xf32> to vector<16x32xbf16>
      %cst_59 = arith.constant dense<0.000000e+00> : vector<16x96xf32>
      %67 = tpu.matmul %66, %17, %cst_59 {dimension_numbers = #tpu.dot_dimension_numbers<[1], [0], [0], [1], [0, 0, 1, 1], [], []>} : vector<16x32xbf16>, vector<32x96xbf16>, vector<16x96xf32> -> vector<16x96xf32>
      %68 = arith.addf %7, %67 : vector<16x96xf32>
      %69 = vector.extract_strided_slice %64 {offsets = [16, 0], sizes = [16, 32], strides = [1, 1]} : vector<64x32xf32> to vector<16x32xf32>
      %70 = arith.truncf %69 : vector<16x32xf32> to vector<16x32xbf16>
      %cst_60 = arith.constant dense<0.000000e+00> : vector<16x96xf32>
      %71 = tpu.matmul %70, %19, %cst_60 {dimension_numbers = #tpu.dot_dimension_numbers<[1], [0], [0], [1], [0, 0, 1, 1], [], []>} : vector<16x32xbf16>, vector<32x96xbf16>, vector<16x96xf32> -> vector<16x96xf32>
      %72 = arith.addf %68, %71 : vector<16x96xf32>
      %73 = vector.extract_strided_slice %64 {offsets = [32, 0], sizes = [16, 32], strides = [1, 1]} : vector<64x32xf32> to vector<16x32xf32>
      %74 = arith.truncf %73 : vector<16x32xf32> to vector<16x32xbf16>
      %cst_61 = arith.constant dense<0.000000e+00> : vector<16x96xf32>
      %75 = tpu.matmul %74, %21, %cst_61 {dimension_numbers = #tpu.dot_dimension_numbers<[1], [0], [0], [1], [0, 0, 1, 1], [], []>} : vector<16x32xbf16>, vector<32x96xbf16>, vector<16x96xf32> -> vector<16x96xf32>
      %76 = arith.addf %72, %75 : vector<16x96xf32>
      %77 = vector.extract_strided_slice %64 {offsets = [48, 0], sizes = [16, 32], strides = [1, 1]} : vector<64x32xf32> to vector<16x32xf32>
      %78 = arith.truncf %77 : vector<16x32xf32> to vector<16x32xbf16>
      %cst_62 = arith.constant dense<0.000000e+00> : vector<16x96xf32>
      %79 = tpu.matmul %78, %23, %cst_62 {dimension_numbers = #tpu.dot_dimension_numbers<[1], [0], [0], [1], [0, 0, 1, 1], [], []>} : vector<16x32xbf16>, vector<32x96xbf16>, vector<16x96xf32> -> vector<16x96xf32>
      %80 = arith.addf %76, %79 : vector<16x96xf32>
      %81 = vector.extract_strided_slice %80 {offsets = [0, 0], sizes = [16, 64], strides = [1, 1]} : vector<16x96xf32> to vector<16x64xf32>
      %cst_63 = arith.constant dense<0.000000e+00> : vector<16x64xf32>
      %82 = tpu.matmul %63, %9, %cst_63 {dimension_numbers = #tpu.dot_dimension_numbers<[1], [0], [0], [1], [0, 0, 1, 1], [], []>} : vector<16x32xbf16>, vector<32x64xbf16>, vector<16x64xf32> -> vector<16x64xf32>
      %83 = arith.addf %81, %82 : vector<16x64xf32>
      %84 = arith.negf %83 : vector<16x64xf32>
      %85 = math.exp %84 : vector<16x64xf32>
      %cst_64 = arith.constant 1.000000e+00 : f32
      %86 = vector.broadcast %cst_64 : f32 to vector<16x64xf32>
      %87 = arith.addf %86, %85 : vector<16x64xf32>
      %88 = arith.divf %86, %87 : vector<16x64xf32>
      %89 = vector.extract_strided_slice %88 {offsets = [0, 0], sizes = [16, 32], strides = [1, 1]} : vector<16x64xf32> to vector<16x32xf32>
      %90 = vector.extract_strided_slice %88 {offsets = [0, 32], sizes = [16, 32], strides = [1, 1]} : vector<16x64xf32> to vector<16x32xf32>
      %91 = vector.extract_strided_slice %80 {offsets = [0, 64], sizes = [16, 32], strides = [1, 1]} : vector<16x96xf32> to vector<16x32xf32>
      %92 = arith.mulf %89, %arg17 : vector<16x32xf32>
      %93 = arith.truncf %92 : vector<16x32xf32> to vector<16x32xbf16>
      %cst_65 = arith.constant dense<0.000000e+00> : vector<16x32xf32>
      %94 = tpu.matmul %93, %10, %cst_65 {dimension_numbers = #tpu.dot_dimension_numbers<[1], [0], [0], [1], [0, 0, 1, 1], [], []>} : vector<16x32xbf16>, vector<32x32xbf16>, vector<16x32xf32> -> vector<16x32xf32>
      %95 = arith.addf %91, %94 : vector<16x32xf32>
      %96 = math.tanh %95 : vector<16x32xf32>
      %cst_66 = arith.constant 1.000000e+00 : f32
      %97 = vector.broadcast %cst_66 : f32 to vector<16x32xf32>
      %98 = arith.subf %97, %90 : vector<16x32xf32>
      %99 = arith.mulf %98, %arg17 : vector<16x32xf32>
      %100 = arith.mulf %90, %96 : vector<16x32xf32>
      %101 = arith.addf %99, %100 : vector<16x32xf32>
      scf.yield %101 : vector<16x32xf32>
    }
    %47 = arith.truncf %46 : vector<16x32xf32> to vector<16x32xbf16>
    %cst_51 = arith.constant dense<0.000000e+00> : vector<16x32xf32>
    %48 = tpu.matmul %47, %11, %cst_51 {dimension_numbers = #tpu.dot_dimension_numbers<[1], [0], [0], [1], [0, 0, 1, 1], [], []>} : vector<16x32xbf16>, vector<32x32xbf16>, vector<16x32xf32> -> vector<16x32xf32>
    %cst_52 = arith.constant dense<0.000000e+00> : vector<16x32xf32>
    %49 = tpu.matmul %3, %12, %cst_52 {dimension_numbers = #tpu.dot_dimension_numbers<[1], [0], [0], [1], [0, 0, 1, 1], [], []>} : vector<16x16xbf16>, vector<16x32xbf16>, vector<16x32xf32> -> vector<16x32xf32>
    %50 = arith.addf %48, %49 : vector<16x32xf32>
    %51 = vector.broadcast %13 : vector<1x32xf32> to vector<16x32xf32>
    %52 = arith.addf %50, %51 : vector<16x32xf32>
    %53 = math.tanh %52 : vector<16x32xf32>
    %54 = arith.truncf %53 : vector<16x32xf32> to vector<16x32xbf16>
    %cst_53 = arith.constant dense<0.000000e+00> : vector<2x32xf32>
    %55 = tpu.matmul %14, %54, %cst_53 {dimension_numbers = #tpu.dot_dimension_numbers<[1], [0], [0], [1], [0, 0, 1, 1], [], []>} : vector<2x16xbf16>, vector<16x32xbf16>, vector<2x32xf32> -> vector<2x32xf32>
    %56 = vector.broadcast %15 : vector<1x32xf32> to vector<2x32xf32>
    %57 = arith.mulf %55, %56 : vector<2x32xf32>
    %cst_54 = arith.constant dense<0.000000e+00> : vector<2xf32>
    %58 = vector.multi_reduction <add>, %57, %cst_54 [1] : vector<2x32xf32> to vector<2xf32>
    %59 = vector.shape_cast %58 : vector<2xf32> to vector<2x1xf32>
    %c0_55 = arith.constant 0 : index
    %c0_56 = arith.constant 0 : index
    %c0_57 = arith.constant 0 : index
    %60 = vector.load %arg15[%c0_55, %c0_56, %c0_57] : memref<1x2x1xf32, #tpu.memory_space<vmem>>, vector<1x2x1xf32>
    %61 = vector.shape_cast %60 : vector<1x2x1xf32> to vector<2x1xf32>
    %62 = vector.shape_cast %59 : vector<2x1xf32> to vector<1x2x1xf32>
    tpu.vector_store %arg15[%c0_55, %c0_56, %c0_57], %62 {strides = array<i32>} : memref<1x2x1xf32, #tpu.memory_space<vmem>>, vector<1x2x1xf32>,
    return
  }
  func.func @transform_0(%arg0: i32) -> (i32, i32, i32) {
    %c0_i32 = arith.constant 0 : i32
    %c0_i32_0 = arith.constant 0 : i32
    %c0_i32_1 = arith.constant 0 : i32
    return %arg0, %c0_i32, %c0_i32_0 : i32, i32, i32
  }
  func.func @transform_1(%arg0: i32) -> (i32, i32, i32) {
    %c0_i32 = arith.constant 0 : i32
    %c0_i32_0 = arith.constant 0 : i32
    %c0_i32_1 = arith.constant 0 : i32
    return %arg0, %c0_i32, %c0_i32_0 : i32, i32, i32
  }
  func.func @transform_2(%arg0: i32) -> (i32, i32, i32) {
    %c0_i32 = arith.constant 0 : i32
    %c0_i32_0 = arith.constant 0 : i32
    %c0_i32_1 = arith.constant 0 : i32
    return %arg0, %c0_i32, %c0_i32_0 : i32, i32, i32
  }
  func.func @transform_3(%arg0: i32) -> (i32, i32, i32) {
    %c0_i32 = arith.constant 0 : i32
    %c0_i32_0 = arith.constant 0 : i32
    %c0_i32_1 = arith.constant 0 : i32
    return %arg0, %c0_i32, %c0_i32_0 : i32, i32, i32
  }
  func.func @transform_4(%arg0: i32) -> (i32, i32, i32) {
    %c0_i32 = arith.constant 0 : i32
    %c0_i32_0 = arith.constant 0 : i32
    %c0_i32_1 = arith.constant 0 : i32
    %c0_i32_2 = arith.constant 0 : i32
    return %c0_i32, %c0_i32_0, %c0_i32_1 : i32, i32, i32
  }
  func.func @transform_5(%arg0: i32) -> (i32, i32) {
    %c0_i32 = arith.constant 0 : i32
    %c0_i32_0 = arith.constant 0 : i32
    %c0_i32_1 = arith.constant 0 : i32
    return %c0_i32, %c0_i32_0 : i32, i32
  }
  func.func @transform_6(%arg0: i32) -> (i32, i32, i32) {
    %c0_i32 = arith.constant 0 : i32
    %c0_i32_0 = arith.constant 0 : i32
    %c0_i32_1 = arith.constant 0 : i32
    %c0_i32_2 = arith.constant 0 : i32
    return %c0_i32, %c0_i32_0, %c0_i32_1 : i32, i32, i32
  }
  func.func @transform_7(%arg0: i32) -> (i32, i32) {
    %c0_i32 = arith.constant 0 : i32
    %c0_i32_0 = arith.constant 0 : i32
    %c0_i32_1 = arith.constant 0 : i32
    return %c0_i32, %c0_i32_0 : i32, i32
  }
  func.func @transform_8(%arg0: i32) -> (i32, i32) {
    %c0_i32 = arith.constant 0 : i32
    %c0_i32_0 = arith.constant 0 : i32
    %c0_i32_1 = arith.constant 0 : i32
    return %c0_i32, %c0_i32_0 : i32, i32
  }
  func.func @transform_9(%arg0: i32) -> (i32, i32) {
    %c0_i32 = arith.constant 0 : i32
    %c0_i32_0 = arith.constant 0 : i32
    %c0_i32_1 = arith.constant 0 : i32
    return %c0_i32, %c0_i32_0 : i32, i32
  }
  func.func @transform_10(%arg0: i32) -> (i32, i32) {
    %c0_i32 = arith.constant 0 : i32
    %c0_i32_0 = arith.constant 0 : i32
    %c0_i32_1 = arith.constant 0 : i32
    return %c0_i32, %c0_i32_0 : i32, i32
  }
  func.func @transform_11(%arg0: i32) -> (i32, i32) {
    %c0_i32 = arith.constant 0 : i32
    %c0_i32_0 = arith.constant 0 : i32
    %c0_i32_1 = arith.constant 0 : i32
    return %c0_i32, %c0_i32_0 : i32, i32
  }
  func.func @transform_12(%arg0: i32) -> (i32, i32) {
    %c0_i32 = arith.constant 0 : i32
    %c0_i32_0 = arith.constant 0 : i32
    %c0_i32_1 = arith.constant 0 : i32
    return %c0_i32, %c0_i32_0 : i32, i32
  }
  func.func @transform_13(%arg0: i32) -> (i32, i32) {
    %c0_i32 = arith.constant 0 : i32
    %c0_i32_0 = arith.constant 0 : i32
    %c0_i32_1 = arith.constant 0 : i32
    return %c0_i32, %c0_i32_0 : i32, i32
  }
  func.func @transform_14(%arg0: i32) -> (i32, i32, i32) {
    %c0_i32 = arith.constant 0 : i32
    %c0_i32_0 = arith.constant 0 : i32
    %c0_i32_1 = arith.constant 0 : i32
    return %arg0, %c0_i32, %c0_i32_0 : i32, i32, i32
  }
}

</mosaic_0001>

<llo_original>
// kernel: tpu_custom_call.1
$region0: #{tpu_custom_call.1}
  #allocation0 [shape = 'u32[]', space=smem, size = 0x4, offset = 0x4, fixed_abs, tag = 'smem constant byte address 0x4 - core index']
  #allocation1 [shape = 'u32[144,128]{1,0:T(1,128)}', space=vmem, size = 0x12000, scoped, tag = 'internal scratch']
  %s0 = inlined_call_operand.vmem [shape: f32[1,16,32], index: 0, kind: input, shape index: {}]
  %s1 = inlined_call_operand.hbm [shape: bf16[1,16,16], index: 1, kind: input, shape index: {}]
  %s2 = inlined_call_operand.hbm [shape: bf16[1,16,32], index: 2, kind: input, shape index: {}]
  %s3 = inlined_call_operand.vmem [shape: f32[1,16,96], index: 3, kind: input, shape index: {}]
  %s4 = inlined_call_operand.vmem [shape: bf16[4,32,16], index: 4, kind: input, shape index: {}]
  %s5 = inlined_call_operand.hbm [shape: bf16[16,16], index: 5, kind: input, shape index: {}]
  %s6 = inlined_call_operand.vmem [shape: bf16[4,32,96], index: 6, kind: input, shape index: {}]
  %s7 = inlined_call_operand.vmem [shape: bf16[32,64], index: 7, kind: input, shape index: {}]
  %s8 = inlined_call_operand.hbm [shape: bf16[32,32], index: 8, kind: input, shape index: {}]
  %s9 = inlined_call_operand.vmem [shape: bf16[32,32], index: 9, kind: input, shape index: {}]
  %s10 = inlined_call_operand.hbm [shape: bf16[16,32], index: 10, kind: input, shape index: {}]
  %s11 = inlined_call_operand.vmem [shape: f32[1,32], index: 11, kind: input, shape index: {}]
  %s12 = inlined_call_operand.vmem [shape: bf16[2,16], index: 12, kind: input, shape index: {}]
  %s13 = inlined_call_operand.vmem [shape: f32[1,32], index: 13, kind: input, shape index: {}]
  %s14 = inlined_call_operand.vmem [shape: f32[1,2,1], index: 14, kind: output, shape index: {}]
  %s15 = sld [smem:[#allocation0]]
  $region93: #{tpu_custom_call.1} parent=0
    _
  %s17 = ssub.s32 1, %s15
  %s18 = scalar_select 0, %s17, %s15
  $region1: #{tpu_custom_call.1} parent=0
    #allocation2 [shape = 'u8[4096]{0}', space=vmem, size = 0x1000, scoped, tag = 'input window, operand 1, single buffered']
    #allocation3 [shape = 's32[1]{0}', space=sflag, size = 0x4, scoped, tag = 'scoped memory for tpu_custom_call.1']
    #allocation4 [shape = 'u8[4096]{0}', space=vmem, size = 0x1000, scoped, tag = 'input window, operand 2, single buffered']
    #allocation5 [shape = 's32[1]{0}', space=sflag, size = 0x4, scoped, tag = 'scoped memory for tpu_custom_call.1']
    #allocation6 [shape = 'u8[4096]{0}', space=vmem, size = 0x1000, scoped, tag = 'input window, operand 5, single buffered']
    #allocation7 [shape = 'u8[8192]{0}', space=vmem, size = 0x2000, scoped, tag = 'input window, operand 8, single buffered']
    #allocation8 [shape = 's32[1]{0}', space=sflag, size = 0x4, scoped, tag = 'scoped memory for tpu_custom_call.1']
    #allocation9 [shape = 'u8[4096]{0}', space=vmem, size = 0x1000, scoped, tag = 'input window, operand 10, single buffered']
    %19 = vsyncpa [#allocation3], 0
    %20 = vsyncpa [#allocation5], 0
    %21 = vsyncpa [#allocation8], 0
    // Predicated region
    $region2: #{tpu_custom_call.1} parent=1 // pred_check
      _
    $region3: #{tpu_custom_call.1} parent=1 // pred_check_branch
      %23 = sbr.rel (0) target = $region5
    $region4: #{tpu_custom_call.1} parent=1 // pred_region
      _
    $region5: #{tpu_custom_call.1} parent=1 // pred_fallthru
      _
    // Predicated region
    $region6: #{tpu_custom_call.1} parent=1 // pred_check
      _
    $region7: #{tpu_custom_call.1} parent=1 // pred_check_branch
      %25 = sbr.rel (0) target = $region9
    $region8: #{tpu_custom_call.1} parent=1 // pred_region
      %s27 = ssub.s32 128, 128
      %28 = vsyncadd [#allocation3], %s27
      %s29 = sshll.u32 [#allocation2], 4
      %s30 = int_to_ptr.vmem [resolvable:$true] %s29
      %35 = dma.hbm_to_vmem [thread:$0]  %s1, 128, %s30, [#allocation3], 64, 64, 4
    $region9: #{tpu_custom_call.1} parent=1 // pred_fallthru
      _
    // Predicated region
    $region10: #{tpu_custom_call.1} parent=1 // pred_check
      _
    $region11: #{tpu_custom_call.1} parent=1 // pred_check_branch
      %37 = sbr.rel (0) target = $region13
    $region12: #{tpu_custom_call.1} parent=1 // pred_region
      %s39 = ssub.s32 128, 128
      %40 = vsyncadd [#allocation5], %s39
      %s41 = sshll.u32 [#allocation4], 4
      %s42 = int_to_ptr.vmem [resolvable:$true] %s41
      %47 = dma.hbm_to_vmem [thread:$0]  %s2, 128, %s42, [#allocation5], 64, 64, 4
    $region13: #{tpu_custom_call.1} parent=1 // pred_fallthru
      _
    // Predicated region
    $region14: #{tpu_custom_call.1} parent=1 // pred_check
      _
    $region15: #{tpu_custom_call.1} parent=1 // pred_check_branch
      %49 = sbr.rel (0) target = $region17
    $region16: #{tpu_custom_call.1} parent=1 // pred_region
      _
    $region17: #{tpu_custom_call.1} parent=1 // pred_fallthru
      _
    // Predicated region
    $region18: #{tpu_custom_call.1} parent=1 // pred_check
      _
    $region19: #{tpu_custom_call.1} parent=1 // pred_check_branch
      %51 = sbr.rel (0) target = $region21
    $region20: #{tpu_custom_call.1} parent=1 // pred_region
      _
    $region21: #{tpu_custom_call.1} parent=1 // pred_fallthru
      _
    // Predicated region
    $region22: #{tpu_custom_call.1} parent=1 // pred_check
      _
    $region23: #{tpu_custom_call.1} parent=1 // pred_check_branch
      %53 = sbr.rel (0) target = $region25
    $region24: #{tpu_custom_call.1} parent=1 // pred_region
      %s55 = ssub.s32 128, 128
      %56 = vsyncadd [#allocation5], %s55
      %s57 = sshll.u32 [#allocation6], 4
      %s58 = int_to_ptr.vmem [resolvable:$true] %s57
      %63 = dma.hbm_to_vmem [thread:$0]  %s5, 128, %s58, [#allocation5], 64, 64, 4
    $region25: #{tpu_custom_call.1} parent=1 // pred_fallthru
      _
    // Predicated region
    $region26: #{tpu_custom_call.1} parent=1 // pred_check
      _
    $region27: #{tpu_custom_call.1} parent=1 // pred_check_branch
      %65 = sbr.rel (0) target = $region29
    $region28: #{tpu_custom_call.1} parent=1 // pred_region
      _
    $region29: #{tpu_custom_call.1} parent=1 // pred_fallthru
      _
    // Predicated region
    $region30: #{tpu_custom_call.1} parent=1 // pred_check
      _
    $region31: #{tpu_custom_call.1} parent=1 // pred_check_branch
      %67 = sbr.rel (0) target = $region33
    $region32: #{tpu_custom_call.1} parent=1 // pred_region
      _
    $region33: #{tpu_custom_call.1} parent=1 // pred_fallthru
      _
    // Predicated region
    $region34: #{tpu_custom_call.1} parent=1 // pred_check
      _
    $region35: #{tpu_custom_call.1} parent=1 // pred_check_branch
      %69 = sbr.rel (0) target = $region37
    $region36: #{tpu_custom_call.1} parent=1 // pred_region
      %s71 = ssub.s32 256, 256
      %72 = vsyncadd [#allocation8], %s71
      %s73 = sshll.u32 [#allocation7], 4
      %s74 = int_to_ptr.vmem [resolvable:$true] %s73
      %79 = dma.hbm_to_vmem [thread:$0]  %s8, 256, %s74, [#allocation8], 64, 64, 4
    $region37: #{tpu_custom_call.1} parent=1 // pred_fallthru
      _
    // Predicated region
    $region38: #{tpu_custom_call.1} parent=1 // pred_check
      _
    $region39: #{tpu_custom_call.1} parent=1 // pred_check_branch
      %81 = sbr.rel (0) target = $region41
    $region40: #{tpu_custom_call.1} parent=1 // pred_region
      _
    $region41: #{tpu_custom_call.1} parent=1 // pred_fallthru
      _
    // Predicated region
    $region42: #{tpu_custom_call.1} parent=1 // pred_check
      _
    $region43: #{tpu_custom_call.1} parent=1 // pred_check_branch
      %83 = sbr.rel (0) target = $region45
    $region44: #{tpu_custom_call.1} parent=1 // pred_region
      %s85 = ssub.s32 128, 128
      %86 = vsyncadd [#allocation8], %s85
      %s87 = sshll.u32 [#allocation9], 4
      %s88 = int_to_ptr.vmem [resolvable:$true] %s87
      %93 = dma.hbm_to_vmem [thread:$0]  %s10, 128, %s88, [#allocation8], 64, 64, 4
    $region45: #{tpu_custom_call.1} parent=1 // pred_fallthru
      _
    // Predicated region
    $region46: #{tpu_custom_call.1} parent=1 // pred_check
      _
    $region47: #{tpu_custom_call.1} parent=1 // pred_check_branch
      %95 = sbr.rel (0) target = $region49
    $region48: #{tpu_custom_call.1} parent=1 // pred_region
      _
    $region49: #{tpu_custom_call.1} parent=1 // pred_fallthru
      _
    // Predicated region
    $region50: #{tpu_custom_call.1} parent=1 // pred_check
      _
    $region51: #{tpu_custom_call.1} parent=1 // pred_check_branch
      %97 = sbr.rel (0) target = $region53
    $region52: #{tpu_custom_call.1} parent=1 // pred_region
      _
    $region53: #{tpu_custom_call.1} parent=1 // pred_fallthru
      _
    // Predicated region
    $region54: #{tpu_custom_call.1} parent=1 // pred_check
      _
    $region55: #{tpu_custom_call.1} parent=1 // pred_check_branch
      %99 = sbr.rel (0) target = $region57
    $region56: #{tpu_custom_call.1} parent=1 // pred_region
      _
    $region57: #{tpu_custom_call.1} parent=1 // pred_fallthru
      _
    // Predicated region
    $region58: #{tpu_custom_call.1} parent=1 // pred_check
      _
    $region59: #{tpu_custom_call.1} parent=1 // pred_check_branch
      %101 = sbr.rel (0) target = $region61
    $region60: #{tpu_custom_call.1} parent=1 // pred_region
      %102 = dma.done [#allocation3], 128
    $region61: #{tpu_custom_call.1} parent=1 // pred_fallthru
      _
    // Predicated region
    $region62: #{tpu_custom_call.1} parent=1 // pred_check
      _
    $region63: #{tpu_custom_call.1} parent=1 // pred_check_branch
      %104 = sbr.rel (0) target = $region65
    $region64: #{tpu_custom_call.1} parent=1 // pred_region
      %105 = dma.done [#allocation5], 128
    $region65: #{tpu_custom_call.1} parent=1 // pred_fallthru
      _
    // Predicated region
    $region66: #{tpu_custom_call.1} parent=1 // pred_check
      _
    $region67: #{tpu_custom_call.1} parent=1 // pred_check_branch
      %107 = sbr.rel (0) target = $region69
    $region68: #{tpu_custom_call.1} parent=1 // pred_region
      %108 = dma.done [#allocation5], 128
    $region69: #{tpu_custom_call.1} parent=1 // pred_fallthru
      _
    // Predicated region
    $region70: #{tpu_custom_call.1} parent=1 // pred_check
      _
    $region71: #{tpu_custom_call.1} parent=1 // pred_check_branch
      %110 = sbr.rel (0) target = $region73
    $region72: #{tpu_custom_call.1} parent=1 // pred_region
      %111 = dma.done [#allocation8], 256
    $region73: #{tpu_custom_call.1} parent=1 // pred_fallthru
      _
    // Predicated region
    $region74: #{tpu_custom_call.1} parent=1 // pred_check
      _
    $region75: #{tpu_custom_call.1} parent=1 // pred_check_branch
      %113 = sbr.rel (0) target = $region77
    $region76: #{tpu_custom_call.1} parent=1 // pred_region
      %114 = dma.done [#allocation8], 128
    $region77: #{tpu_custom_call.1} parent=1 // pred_fallthru
      _
    %v116 = vld [vmem:[%s0] sm:$0xff]
    %v117 = vld [vmem:[%s0 + $0x8] sm:$0xff]
    %v118 = vld [vmem:[#allocation2] sm:$0xf]
    %v119 = vld [vmem:[#allocation2 + $0x4] sm:$0xf]
    %v120 = vld [vmem:[#allocation4] sm:$0xf]
    %v121 = vld [vmem:[#allocation4 + $0x4] sm:$0xf]
    %v122 = vld [vmem:[%s3] sm:$0xff]
    %v123 = vld [vmem:[%s3 + $0x8] sm:$0xff]
    %v124 = vld [vmem:[#allocation6] sm:$0xf]
    %v125 = vld [vmem:[#allocation6 + $0x4] sm:$0xf]
    %v126 = vld [vmem:[%s7] sm:$0xf]
    %v127 = vld [vmem:[%s7 + $0x4] sm:$0xf]
    %v128 = vld [vmem:[%s7 + $0x8] sm:$0xf]
    %v129 = vld [vmem:[%s7 + $0xc] sm:$0xf]
    %v130 = vld [vmem:[#allocation7] sm:$0xf]
    %v131 = vld [vmem:[#allocation7 + $0x4] sm:$0xf]
    %v132 = vld [vmem:[#allocation7 + $0x8] sm:$0xf]
    %v133 = vld [vmem:[#allocation7 + $0xc] sm:$0xf]
    %v134 = vld [vmem:[%s9] sm:$0xf]
    %v135 = vld [vmem:[%s9 + $0x4] sm:$0xf]
    %v136 = vld [vmem:[%s9 + $0x8] sm:$0xf]
    %v137 = vld [vmem:[%s9 + $0xc] sm:$0xf]
    %v138 = vld [vmem:[#allocation9] sm:$0xf]
    %v139 = vld [vmem:[#allocation9 + $0x4] sm:$0xf]
    %v140 = vld [vmem:[%s11] sm:$0x1]
    %v141 = vld [vmem:[%s12] sm:$0x1]
    %v142 = vld [vmem:[%s13] sm:$0x1]
    %v143 = vld [vmem:[%s6] sm:$0xf]
    %v144 = vld [vmem:[%s6 + $0x4] sm:$0xf]
    %v145 = vld [vmem:[%s6 + $0x8] sm:$0xf]
    %v146 = vld [vmem:[%s6 + $0xc] sm:$0xf]
    %s147 = scalar_lea.vmem %s6, 16
    %v148 = vld [vmem:[%s147] sm:$0xf]
    %v149 = vld [vmem:[%s147 + $0x4] sm:$0xf]
    %v150 = vld [vmem:[%s147 + $0x8] sm:$0xf]
    %v151 = vld [vmem:[%s147 + $0xc] sm:$0xf]
    %s152 = scalar_lea.vmem %s6, 32
    %v153 = vld [vmem:[%s152] sm:$0xf]
    %v154 = vld [vmem:[%s152 + $0x4] sm:$0xf]
    %v155 = vld [vmem:[%s152 + $0x8] sm:$0xf]
    %v156 = vld [vmem:[%s152 + $0xc] sm:$0xf]
    %s157 = scalar_lea.vmem %s6, 48
    %v158 = vld [vmem:[%s157] sm:$0xf]
    %v159 = vld [vmem:[%s157 + $0x4] sm:$0xf]
    %v160 = vld [vmem:[%s157 + $0x8] sm:$0xf]
    %v161 = vld [vmem:[%s157 + $0xc] sm:$0xf]
    %v162 = vld [vmem:[%s4] sm:$0xf]
    %v163 = vld [vmem:[%s4 + $0x4] sm:$0xf]
    %v164 = vld [vmem:[%s4 + $0x8] sm:$0xf]
    %v165 = vld [vmem:[%s4 + $0xc] sm:$0xf]
    %v168 = vunpack.c.l.b16 %v120
    %v169 = vunpack.c.l.b16 %v121
    %v170 = vpack.c.b16 %v169, %v168
    %v175 = vunpack.c.l.b16 %v162
    %v176 = vunpack.c.l.b16 %v163
    %v177 = vunpack.c.l.b16 %v164
    %v178 = vunpack.c.l.b16 %v165
    %v179 = vpack.c.b16 %v176, %v175
    %v180 = vpack.c.b16 %v178, %v177
    %vm183 = vcmask 261120
    %v185 = vsel %vm183, %v170, 0
    %187 = vmatprep.subr.bf16.mxu0 0
    %188 = vmatpush1.bf16.msra.mxu0 %v179
    %189 = vmatprep.subr.bf16.mxu0 0
    %190 = vmatpush1.bf16.msra.mxu0 %v180
    %191 = vmatprep.subr.bf16.mxu0 0
    %192 = vmatpush1.bf16.msra.mxu0 0
    %193 = vmatprep.subr.bf16.mxu0 0
    %194 = vmatpush1.bf16.msra.mxu0 0
    %195 = vmatprep.subr.bf16.mxu0 0
    %196 = vmatpush1.bf16.msra.mxu0 0
    %197 = vmatprep.subr.bf16.mxu0 0
    %198 = vmatpush1.bf16.msra.mxu0 0
    %199 = vmatprep.subr.bf16.mxu0 0
    %200 = vmatpush1.bf16.msra.mxu0 0
    %201 = vmatprep.subr.bf16.mxu0 0
    %202 = vmatpush1.bf16.msra.mxu0 0
    %203 = vmatprep.subr.bf16.mxu0 0
    %204 = vmatpush1.bf16.msra.mxu0 0
    %205 = vmatprep.subr.bf16.mxu0 0
    %206 = vmatpush1.bf16.msra.mxu0 0
    %207 = vmatprep.subr.bf16.mxu0 0
    %208 = vmatpush1.bf16.msra.mxu0 0
    %209 = vmatprep.subr.bf16.mxu0 0
    %210 = vmatpush1.bf16.msra.mxu0 0
    %211 = vmatprep.subr.bf16.mxu0 0
    %212 = vmatpush1.bf16.msra.mxu0 0
    %213 = vmatprep.subr.bf16.mxu0 0
    %214 = vmatpush1.bf16.msra.mxu0 0
    %215 = vmatprep.subr.bf16.mxu0 0
    %216 = vmatpush1.bf16.msra.mxu0 0
    %217 = vmatprep.subr.bf16.mxu0 0
    %218 = vmatpush1.bf16.msra.mxu0 0
    %219 = vmatprep.mubr.bf16.mxu0 0
    %220 = vmatmul.mubr.bf16.gmra.mrb[0].mxu0 %v185
    %v221 = vpop.f32.mrb[0].mxu0
    %v222 = vadd.f32 0.0, %v221
    %v223 = vpop.f32.mrb[0].mxu0
    %v224 = vpop.f32.mrb[0].mxu0
    %v225 = vadd.f32 0.0, %v224
    %v226 = vpop.f32.mrb[0].mxu0
    %227 = vdwg.mxu0
    %v228 = vpack.c.bf16 %v225, %v222
    %v231 = vunpack.c.l.b16 %v124
    %v232 = vunpack.c.l.b16 %v125
    %v233 = vpack.c.b16 %v232, %v231
    %v235 = vmul.bf16 %v228, %v233
    %s236 = scalar_lea.vmem %s4, 16
    %v237 = vld [vmem:[%s236] sm:$0xf]
    %v238 = vld [vmem:[%s236 + $0x4] sm:$0xf]
    %v239 = vld [vmem:[%s236 + $0x8] sm:$0xf]
    %v240 = vld [vmem:[%s236 + $0xc] sm:$0xf]
    %v245 = vunpack.c.l.b16 %v237
    %v246 = vunpack.c.l.b16 %v238
    %v247 = vunpack.c.l.b16 %v239
    %v248 = vunpack.c.l.b16 %v240
    %v249 = vpack.c.b16 %v246, %v245
    %v250 = vpack.c.b16 %v248, %v247
    %253 = vmatprep.subr.bf16.mxu0 0
    %254 = vmatpush1.bf16.msra.mxu0 %v249
    %255 = vmatprep.subr.bf16.mxu0 0
    %256 = vmatpush1.bf16.msra.mxu0 %v250
    %257 = vmatprep.subr.bf16.mxu0 0
    %258 = vmatpush1.bf16.msra.mxu0 0
    %259 = vmatprep.subr.bf16.mxu0 0
    %260 = vmatpush1.bf16.msra.mxu0 0
    %261 = vmatprep.subr.bf16.mxu0 0
    %262 = vmatpush1.bf16.msra.mxu0 0
    %263 = vmatprep.subr.bf16.mxu0 0
    %264 = vmatpush1.bf16.msra.mxu0 0
    %265 = vmatprep.subr.bf16.mxu0 0
    %266 = vmatpush1.bf16.msra.mxu0 0
    %267 = vmatprep.subr.bf16.mxu0 0
    %268 = vmatpush1.bf16.msra.mxu0 0
    %269 = vmatprep.subr.bf16.mxu0 0
    %270 = vmatpush1.bf16.msra.mxu0 0
    %271 = vmatprep.subr.bf16.mxu0 0
    %272 = vmatpush1.bf16.msra.mxu0 0
    %273 = vmatprep.subr.bf16.mxu0 0
    %274 = vmatpush1.bf16.msra.mxu0 0
    %275 = vmatprep.subr.bf16.mxu0 0
    %276 = vmatpush1.bf16.msra.mxu0 0
    %277 = vmatprep.subr.bf16.mxu0 0
    %278 = vmatpush1.bf16.msra.mxu0 0
    %279 = vmatprep.subr.bf16.mxu0 0
    %280 = vmatpush1.bf16.msra.mxu0 0
    %281 = vmatprep.subr.bf16.mxu0 0
    %282 = vmatpush1.bf16.msra.mxu0 0
    %283 = vmatprep.subr.bf16.mxu0 0
    %284 = vmatpush1.bf16.msra.mxu0 0
    %285 = vmatprep.mubr.bf16.mxu0 0
    %286 = vmatmul.mubr.bf16.gmra.mrb[0].mxu0 %v185
    %v287 = vpop.f32.mrb[0].mxu0
    %v288 = vadd.f32 0.0, %v287
    %v289 = vpop.f32.mrb[0].mxu0
    %v290 = vpop.f32.mrb[0].mxu0
    %v291 = vadd.f32 0.0, %v290
    %v292 = vpop.f32.mrb[0].mxu0
    %293 = vdwg.mxu0
    %v294 = vpack.c.bf16 %v291, %v288
    %v295 = vmul.bf16 %v294, %v233
    %s296 = scalar_lea.vmem %s4, 32
    %v297 = vld [vmem:[%s296] sm:$0xf]
    %v298 = vld [vmem:[%s296 + $0x4] sm:$0xf]
    %v299 = vld [vmem:[%s296 + $0x8] sm:$0xf]
    %v300 = vld [vmem:[%s296 + $0xc] sm:$0xf]
    %v305 = vunpack.c.l.b16 %v297
    %v306 = vunpack.c.l.b16 %v298
    %v307 = vunpack.c.l.b16 %v299
    %v308 = vunpack.c.l.b16 %v300
    %v309 = vpack.c.b16 %v306, %v305
    %v310 = vpack.c.b16 %v308, %v307
    %313 = vmatprep.subr.bf16.mxu0 0
    %314 = vmatpush1.bf16.msra.mxu0 %v309
    %315 = vmatprep.subr.bf16.mxu0 0
    %316 = vmatpush1.bf16.msra.mxu0 %v310
    %317 = vmatprep.subr.bf16.mxu0 0
    %318 = vmatpush1.bf16.msra.mxu0 0
    %319 = vmatprep.subr.bf16.mxu0 0
    %320 = vmatpush1.bf16.msra.mxu0 0
    %321 = vmatprep.subr.bf16.mxu0 0
    %322 = vmatpush1.bf16.msra.mxu0 0
    %323 = vmatprep.subr.bf16.mxu0 0
    %324 = vmatpush1.bf16.msra.mxu0 0
    %325 = vmatprep.subr.bf16.mxu0 0
    %326 = vmatpush1.bf16.msra.mxu0 0
    %327 = vmatprep.subr.bf16.mxu0 0
    %328 = vmatpush1.bf16.msra.mxu0 0
    %329 = vmatprep.subr.bf16.mxu0 0
    %330 = vmatpush1.bf16.msra.mxu0 0
    %331 = vmatprep.subr.bf16.mxu0 0
    %332 = vmatpush1.bf16.msra.mxu0 0
    %333 = vmatprep.subr.bf16.mxu0 0
    %334 = vmatpush1.bf16.msra.mxu0 0
    %335 = vmatprep.subr.bf16.mxu0 0
    %336 = vmatpush1.bf16.msra.mxu0 0
    %337 = vmatprep.subr.bf16.mxu0 0
    %338 = vmatpush1.bf16.msra.mxu0 0
    %339 = vmatprep.subr.bf16.mxu0 0
    %340 = vmatpush1.bf16.msra.mxu0 0
    %341 = vmatprep.subr.bf16.mxu0 0
    %342 = vmatpush1.bf16.msra.mxu0 0
    %343 = vmatprep.subr.bf16.mxu0 0
    %344 = vmatpush1.bf16.msra.mxu0 0
    %345 = vmatprep.mubr.bf16.mxu0 0
    %346 = vmatmul.mubr.bf16.gmra.mrb[0].mxu0 %v185
    %v347 = vpop.f32.mrb[0].mxu0
    %v348 = vadd.f32 0.0, %v347
    %v349 = vpop.f32.mrb[0].mxu0
    %v350 = vpop.f32.mrb[0].mxu0
    %v351 = vadd.f32 0.0, %v350
    %v352 = vpop.f32.mrb[0].mxu0
    %353 = vdwg.mxu0
    %v354 = vpack.c.bf16 %v351, %v348
    %v355 = vmul.bf16 %v354, %v233
    %s356 = scalar_lea.vmem %s4, 48
    %v357 = vld [vmem:[%s356] sm:$0xf]
    %v358 = vld [vmem:[%s356 + $0x4] sm:$0xf]
    %v359 = vld [vmem:[%s356 + $0x8] sm:$0xf]
    %v360 = vld [vmem:[%s356 + $0xc] sm:$0xf]
    %v365 = vunpack.c.l.b16 %v357
    %v366 = vunpack.c.l.b16 %v358
    %v367 = vunpack.c.l.b16 %v359
    %v368 = vunpack.c.l.b16 %v360
    %v369 = vpack.c.b16 %v366, %v365
    %v370 = vpack.c.b16 %v368, %v367
    %373 = vmatprep.subr.bf16.mxu0 0
    %374 = vmatpush1.bf16.msra.mxu0 %v369
    %375 = vmatprep.subr.bf16.mxu0 0
    %376 = vmatpush1.bf16.msra.mxu0 %v370
    %377 = vmatprep.subr.bf16.mxu0 0
    %378 = vmatpush1.bf16.msra.mxu0 0
    %379 = vmatprep.subr.bf16.mxu0 0
    %380 = vmatpush1.bf16.msra.mxu0 0
    %381 = vmatprep.subr.bf16.mxu0 0
    %382 = vmatpush1.bf16.msra.mxu0 0
    %383 = vmatprep.subr.bf16.mxu0 0
    %384 = vmatpush1.bf16.msra.mxu0 0
    %385 = vmatprep.subr.bf16.mxu0 0
    %386 = vmatpush1.bf16.msra.mxu0 0
    %387 = vmatprep.subr.bf16.mxu0 0
    %388 = vmatpush1.bf16.msra.mxu0 0
    %389 = vmatprep.subr.bf16.mxu0 0
    %390 = vmatpush1.bf16.msra.mxu0 0
    %391 = vmatprep.subr.bf16.mxu0 0
    %392 = vmatpush1.bf16.msra.mxu0 0
    %393 = vmatprep.subr.bf16.mxu0 0
    %394 = vmatpush1.bf16.msra.mxu0 0
    %395 = vmatprep.subr.bf16.mxu0 0
    %396 = vmatpush1.bf16.msra.mxu0 0
    %397 = vmatprep.subr.bf16.mxu0 0
    %398 = vmatpush1.bf16.msra.mxu0 0
    %399 = vmatprep.subr.bf16.mxu0 0
    %400 = vmatpush1.bf16.msra.mxu0 0
    %401 = vmatprep.subr.bf16.mxu0 0
    %402 = vmatpush1.bf16.msra.mxu0 0
    %403 = vmatprep.subr.bf16.mxu0 0
    %404 = vmatpush1.bf16.msra.mxu0 0
    %405 = vmatprep.mubr.bf16.mxu0 0
    %406 = vmatmul.mubr.bf16.gmra.mrb[0].mxu0 %v185
    %v407 = vpop.f32.mrb[0].mxu0
    %v408 = vadd.f32 0.0, %v407
    %v409 = vpop.f32.mrb[0].mxu0
    %v410 = vpop.f32.mrb[0].mxu0
    %v411 = vadd.f32 0.0, %v410
    %v412 = vpop.f32.mrb[0].mxu0
    %413 = vdwg.mxu0
    %v414 = vpack.c.bf16 %v411, %v408
    %v415 = vmul.bf16 %v414, %v233
    loop: start=0, step=1, limit=3
    $region78: #{tpu_custom_call.1} parent=1 // loop_pre_header
      _
    $region79: #{tpu_custom_call.1} parent=1 // loop_header
      %s417 = sphi 0, %s421
      %p418 = scmp.ge.s32.totalorder %s417, 3
      %v422 = vphi %v116, %v907
      %v423 = vphi %v117, %v909
    $region80: #{tpu_custom_call.1} parent=1 // loop_header_branch
      %420 = sbr.rel (%p418) target = $region84
    $region81: #{tpu_custom_call.1} parent=1 // loop_body
      %v424 = vpack.c.bf16 %v423, %v422
      %vm425 = vcmask 130048
      %v427 = vsel %vm425, %v235, 0
      %v430 = vsel %vm425, %v295, 0
      %v433 = vsel %vm425, %v355, 0
      %v436 = vsel %vm425, %v415, 0
      %438 = vmatprep.subr.bf16.mxu0 0
      %439 = vmatpush1.bf16.msra.mxu0 %v424
      %440 = vmatprep.subr.bf16.mxu0 0
      %441 = vmatpush1.bf16.msra.mxu0 0
      %442 = vmatprep.subr.bf16.mxu0 0
      %443 = vmatpush1.bf16.msra.mxu0 0
      %444 = vmatprep.subr.bf16.mxu0 0
      %445 = vmatpush1.bf16.msra.mxu0 0
      %446 = vmatprep.subr.bf16.mxu0 0
      %447 = vmatpush1.bf16.msra.mxu0 0
      %448 = vmatprep.subr.bf16.mxu0 0
      %449 = vmatpush1.bf16.msra.mxu0 0
      %450 = vmatprep.subr.bf16.mxu0 0
      %451 = vmatpush1.bf16.msra.mxu0 0
      %452 = vmatprep.subr.bf16.mxu0 0
      %453 = vmatpush1.bf16.msra.mxu0 0
      %454 = vmatprep.subr.bf16.mxu0 0
      %455 = vmatpush1.bf16.msra.mxu0 0
      %456 = vmatprep.subr.bf16.mxu0 0
      %457 = vmatpush1.bf16.msra.mxu0 0
      %458 = vmatprep.subr.bf16.mxu0 0
      %459 = vmatpush1.bf16.msra.mxu0 0
      %460 = vmatprep.subr.bf16.mxu0 0
      %461 = vmatpush1.bf16.msra.mxu0 0
      %462 = vmatprep.subr.bf16.mxu0 0
      %463 = vmatpush1.bf16.msra.mxu0 0
      %464 = vmatprep.subr.bf16.mxu0 0
      %465 = vmatpush1.bf16.msra.mxu0 0
      %466 = vmatprep.subr.bf16.mxu0 0
      %467 = vmatpush1.bf16.msra.mxu0 0
      %468 = vmatprep.subr.bf16.mxu0 0
      %469 = vmatpush1.bf16.msra.mxu0 0
      %470 = vmatprep.mubr.bf16.mxu0 0
      %471 = vmatmul.mubr.bf16.gmra.mrb[0].mxu0 %v427
      %v472 = vpop.f32.mrb[0].mxu0
      %v473 = vadd.f32 0.0, %v472
      %v474 = vpop.f32.mrb[0].mxu0
      %v475 = vpop.f32.mrb[0].mxu0
      %v476 = vadd.f32 0.0, %v475
      %v477 = vpop.f32.mrb[0].mxu0
      %478 = vmatprep.mubr.bf16.mxu0 0
      %479 = vmatmul.mubr.bf16.gmra.mrb[0].mxu0 %v430
      %v480 = vpop.f32.mrb[0].mxu0
      %v481 = vadd.f32 0.0, %v480
      %v482 = vpop.f32.mrb[0].mxu0
      %v483 = vpop.f32.mrb[0].mxu0
      %v484 = vadd.f32 0.0, %v483
      %v485 = vpop.f32.mrb[0].mxu0
      %486 = vmatprep.mubr.bf16.mxu0 0
      %487 = vmatmul.mubr.bf16.gmra.mrb[0].mxu0 %v433
      %v488 = vpop.f32.mrb[0].mxu0
      %v489 = vadd.f32 0.0, %v488
      %v490 = vpop.f32.mrb[0].mxu0
      %v491 = vpop.f32.mrb[0].mxu0
      %v492 = vadd.f32 0.0, %v491
      %v493 = vpop.f32.mrb[0].mxu0
      %494 = vmatprep.mubr.bf16.mxu0 0
      %495 = vmatmul.mubr.bf16.gmra.mrb[0].mxu0 %v436
      %v496 = vpop.f32.mrb[0].mxu0
      %v497 = vadd.f32 0.0, %v496
      %v498 = vpop.f32.mrb[0].mxu0
      %v499 = vpop.f32.mrb[0].mxu0
      %v500 = vadd.f32 0.0, %v499
      %v501 = vpop.f32.mrb[0].mxu0
      %502 = vdwg.mxu0
      %v503 = vpack.c.bf16 %v476, %v473
      %v508 = vunpack.c.l.b16 %v143
      %v509 = vunpack.c.l.b16 %v144
      %v510 = vunpack.c.l.b16 %v145
      %v511 = vunpack.c.l.b16 %v146
      %v512 = vpack.c.b16 %v509, %v508
      %v513 = vpack.c.b16 %v511, %v510
      %v517 = vsel %vm183, %v503, 0
      %519 = vmatprep.subr.bf16.mxu0 0
      %520 = vmatpush1.bf16.msra.mxu0 %v512
      %521 = vmatprep.subr.bf16.mxu0 0
      %522 = vmatpush1.bf16.msra.mxu0 %v513
      %523 = vmatprep.subr.bf16.mxu0 0
      %524 = vmatpush1.bf16.msra.mxu0 0
      %525 = vmatprep.subr.bf16.mxu0 0
      %526 = vmatpush1.bf16.msra.mxu0 0
      %527 = vmatprep.subr.bf16.mxu0 0
      %528 = vmatpush1.bf16.msra.mxu0 0
      %529 = vmatprep.subr.bf16.mxu0 0
      %530 = vmatpush1.bf16.msra.mxu0 0
      %531 = vmatprep.subr.bf16.mxu0 0
      %532 = vmatpush1.bf16.msra.mxu0 0
      %533 = vmatprep.subr.bf16.mxu0 0
      %534 = vmatpush1.bf16.msra.mxu0 0
      %535 = vmatprep.subr.bf16.mxu0 0
      %536 = vmatpush1.bf16.msra.mxu0 0
      %537 = vmatprep.subr.bf16.mxu0 0
      %538 = vmatpush1.bf16.msra.mxu0 0
      %539 = vmatprep.subr.bf16.mxu0 0
      %540 = vmatpush1.bf16.msra.mxu0 0
      %541 = vmatprep.subr.bf16.mxu0 0
      %542 = vmatpush1.bf16.msra.mxu0 0
      %543 = vmatprep.subr.bf16.mxu0 0
      %544 = vmatpush1.bf16.msra.mxu0 0
      %545 = vmatprep.subr.bf16.mxu0 0
      %546 = vmatpush1.bf16.msra.mxu0 0
      %547 = vmatprep.subr.bf16.mxu0 0
      %548 = vmatpush1.bf16.msra.mxu0 0
      %549 = vmatprep.subr.bf16.mxu0 0
      %550 = vmatpush1.bf16.msra.mxu0 0
      %551 = vmatprep.mubr.bf16.mxu0 0
      %552 = vmatmul.mubr.bf16.gmra.mrb[0].mxu0 %v517
      %v553 = vpop.f32.mrb[0].mxu0
      %v554 = vadd.f32 0.0, %v553
      %v555 = vpop.f32.mrb[0].mxu0
      %v556 = vpop.f32.mrb[0].mxu0
      %v557 = vadd.f32 0.0, %v556
      %v558 = vpop.f32.mrb[0].mxu0
      %559 = vdwg.mxu0
      %v560 = vadd.f32 %v122, %v554
      %v561 = vadd.f32 %v123, %v557
      %v562 = vpack.c.bf16 %v484, %v481
      %v567 = vunpack.c.l.b16 %v148
      %v568 = vunpack.c.l.b16 %v149
      %v569 = vunpack.c.l.b16 %v150
      %v570 = vunpack.c.l.b16 %v151
      %v571 = vpack.c.b16 %v568, %v567
      %v572 = vpack.c.b16 %v570, %v569
      %v576 = vsel %vm183, %v562, 0
      %578 = vmatprep.subr.bf16.mxu0 0
      %579 = vmatpush1.bf16.msra.mxu0 %v571
      %580 = vmatprep.subr.bf16.mxu0 0
      %581 = vmatpush1.bf16.msra.mxu0 %v572
      %582 = vmatprep.subr.bf16.mxu0 0
      %583 = vmatpush1.bf16.msra.mxu0 0
      %584 = vmatprep.subr.bf16.mxu0 0
      %585 = vmatpush1.bf16.msra.mxu0 0
      %586 = vmatprep.subr.bf16.mxu0 0
      %587 = vmatpush1.bf16.msra.mxu0 0
      %588 = vmatprep.subr.bf16.mxu0 0
      %589 = vmatpush1.bf16.msra.mxu0 0
      %590 = vmatprep.subr.bf16.mxu0 0
      %591 = vmatpush1.bf16.msra.mxu0 0
      %592 = vmatprep.subr.bf16.mxu0 0
      %593 = vmatpush1.bf16.msra.mxu0 0
      %594 = vmatprep.subr.bf16.mxu0 0
      %595 = vmatpush1.bf16.msra.mxu0 0
      %596 = vmatprep.subr.bf16.mxu0 0
      %597 = vmatpush1.bf16.msra.mxu0 0
      %598 = vmatprep.subr.bf16.mxu0 0
      %599 = vmatpush1.bf16.msra.mxu0 0
      %600 = vmatprep.subr.bf16.mxu0 0
      %601 = vmatpush1.bf16.msra.mxu0 0
      %602 = vmatprep.subr.bf16.mxu0 0
      %603 = vmatpush1.bf16.msra.mxu0 0
      %604 = vmatprep.subr.bf16.mxu0 0
      %605 = vmatpush1.bf16.msra.mxu0 0
      %606 = vmatprep.subr.bf16.mxu0 0
      %607 = vmatpush1.bf16.msra.mxu0 0
      %608 = vmatprep.subr.bf16.mxu0 0
      %609 = vmatpush1.bf16.msra.mxu0 0
      %610 = vmatprep.mubr.bf16.mxu0 0
      %611 = vmatmul.mubr.bf16.gmra.mrb[0].mxu0 %v576
      %v612 = vpop.f32.mrb[0].mxu0
      %v613 = vadd.f32 0.0, %v612
      %v614 = vpop.f32.mrb[0].mxu0
      %v615 = vpop.f32.mrb[0].mxu0
      %v616 = vadd.f32 0.0, %v615
      %v617 = vpop.f32.mrb[0].mxu0
      %618 = vdwg.mxu0
      %v619 = vadd.f32 %v560, %v613
      %v620 = vadd.f32 %v561, %v616
      %v621 = vpack.c.bf16 %v492, %v489
      %v626 = vunpack.c.l.b16 %v153
      %v627 = vunpack.c.l.b16 %v154
      %v628 = vunpack.c.l.b16 %v155
      %v629 = vunpack.c.l.b16 %v156
      %v630 = vpack.c.b16 %v627, %v626
      %v631 = vpack.c.b16 %v629, %v628
      %v635 = vsel %vm183, %v621, 0
      %637 = vmatprep.subr.bf16.mxu0 0
      %638 = vmatpush1.bf16.msra.mxu0 %v630
      %639 = vmatprep.subr.bf16.mxu0 0
      %640 = vmatpush1.bf16.msra.mxu0 %v631
      %641 = vmatprep.subr.bf16.mxu0 0
      %642 = vmatpush1.bf16.msra.mxu0 0
      %643 = vmatprep.subr.bf16.mxu0 0
      %644 = vmatpush1.bf16.msra.mxu0 0
      %645 = vmatprep.subr.bf16.mxu0 0
      %646 = vmatpush1.bf16.msra.mxu0 0
      %647 = vmatprep.subr.bf16.mxu0 0
      %648 = vmatpush1.bf16.msra.mxu0 0
      %649 = vmatprep.subr.bf16.mxu0 0
      %650 = vmatpush1.bf16.msra.mxu0 0
      %651 = vmatprep.subr.bf16.mxu0 0
      %652 = vmatpush1.bf16.msra.mxu0 0
      %653 = vmatprep.subr.bf16.mxu0 0
      %654 = vmatpush1.bf16.msra.mxu0 0
      %655 = vmatprep.subr.bf16.mxu0 0
      %656 = vmatpush1.bf16.msra.mxu0 0
      %657 = vmatprep.subr.bf16.mxu0 0
      %658 = vmatpush1.bf16.msra.mxu0 0
      %659 = vmatprep.subr.bf16.mxu0 0
      %660 = vmatpush1.bf16.msra.mxu0 0
      %661 = vmatprep.subr.bf16.mxu0 0
      %662 = vmatpush1.bf16.msra.mxu0 0
      %663 = vmatprep.subr.bf16.mxu0 0
      %664 = vmatpush1.bf16.msra.mxu0 0
      %665 = vmatprep.subr.bf16.mxu0 0
      %666 = vmatpush1.bf16.msra.mxu0 0
      %667 = vmatprep.subr.bf16.mxu0 0
      %668 = vmatpush1.bf16.msra.mxu0 0
      %669 = vmatprep.mubr.bf16.mxu0 0
      %670 = vmatmul.mubr.bf16.gmra.mrb[0].mxu0 %v635
      %v671 = vpop.f32.mrb[0].mxu0
      %v672 = vadd.f32 0.0, %v671
      %v673 = vpop.f32.mrb[0].mxu0
      %v674 = vpop.f32.mrb[0].mxu0
      %v675 = vadd.f32 0.0, %v674
      %v676 = vpop.f32.mrb[0].mxu0
      %677 = vdwg.mxu0
      %v678 = vadd.f32 %v619, %v672
      %v679 = vadd.f32 %v620, %v675
      %v680 = vpack.c.bf16 %v500, %v497
      %v685 = vunpack.c.l.b16 %v158
      %v686 = vunpack.c.l.b16 %v159
      %v687 = vunpack.c.l.b16 %v160
      %v688 = vunpack.c.l.b16 %v161
      %v689 = vpack.c.b16 %v686, %v685
      %v690 = vpack.c.b16 %v688, %v687
      %v694 = vsel %vm183, %v680, 0
      %696 = vmatprep.subr.bf16.mxu0 0
      %697 = vmatpush1.bf16.msra.mxu0 %v689
      %698 = vmatprep.subr.bf16.mxu0 0
      %699 = vmatpush1.bf16.msra.mxu0 %v690
      %700 = vmatprep.subr.bf16.mxu0 0
      %701 = vmatpush1.bf16.msra.mxu0 0
      %702 = vmatprep.subr.bf16.mxu0 0
      %703 = vmatpush1.bf16.msra.mxu0 0
      %704 = vmatprep.subr.bf16.mxu0 0
      %705 = vmatpush1.bf16.msra.mxu0 0
      %706 = vmatprep.subr.bf16.mxu0 0
      %707 = vmatpush1.bf16.msra.mxu0 0
      %708 = vmatprep.subr.bf16.mxu0 0
      %709 = vmatpush1.bf16.msra.mxu0 0
      %710 = vmatprep.subr.bf16.mxu0 0
      %711 = vmatpush1.bf16.msra.mxu0 0
      %712 = vmatprep.subr.bf16.mxu0 0
      %713 = vmatpush1.bf16.msra.mxu0 0
      %714 = vmatprep.subr.bf16.mxu0 0
      %715 = vmatpush1.bf16.msra.mxu0 0
      %716 = vmatprep.subr.bf16.mxu0 0
      %717 = vmatpush1.bf16.msra.mxu0 0
      %718 = vmatprep.subr.bf16.mxu0 0
      %719 = vmatpush1.bf16.msra.mxu0 0
      %720 = vmatprep.subr.bf16.mxu0 0
      %721 = vmatpush1.bf16.msra.mxu0 0
      %722 = vmatprep.subr.bf16.mxu0 0
      %723 = vmatpush1.bf16.msra.mxu0 0
      %724 = vmatprep.subr.bf16.mxu0 0
      %725 = vmatpush1.bf16.msra.mxu0 0
      %726 = vmatprep.subr.bf16.mxu0 0
      %727 = vmatpush1.bf16.msra.mxu0 0
      %728 = vmatprep.mubr.bf16.mxu0 0
      %729 = vmatmul.mubr.bf16.gmra.mrb[0].mxu0 %v694
      %v730 = vpop.f32.mrb[0].mxu0
      %v731 = vadd.f32 0.0, %v730
      %v732 = vpop.f32.mrb[0].mxu0
      %v733 = vpop.f32.mrb[0].mxu0
      %v734 = vadd.f32 0.0, %v733
      %v735 = vpop.f32.mrb[0].mxu0
      %736 = vdwg.mxu0
      %v737 = vadd.f32 %v678, %v731
      %v738 = vadd.f32 %v679, %v734
      %v743 = vunpack.c.l.b16 %v126
      %v744 = vunpack.c.l.b16 %v127
      %v745 = vunpack.c.l.b16 %v128
      %v746 = vunpack.c.l.b16 %v129
      %v747 = vpack.c.b16 %v744, %v743
      %v748 = vpack.c.b16 %v746, %v745
      %v752 = vsel %vm183, %v424, 0
      %754 = vmatprep.subr.bf16.mxu0 0
      %755 = vmatpush1.bf16.msra.mxu0 %v747
      %756 = vmatprep.subr.bf16.mxu0 0
      %757 = vmatpush1.bf16.msra.mxu0 %v748
      %758 = vmatprep.subr.bf16.mxu0 0
      %759 = vmatpush1.bf16.msra.mxu0 0
      %760 = vmatprep.subr.bf16.mxu0 0
      %761 = vmatpush1.bf16.msra.mxu0 0
      %762 = vmatprep.subr.bf16.mxu0 0
      %763 = vmatpush1.bf16.msra.mxu0 0
      %764 = vmatprep.subr.bf16.mxu0 0
      %765 = vmatpush1.bf16.msra.mxu0 0
      %766 = vmatprep.subr.bf16.mxu0 0
      %767 = vmatpush1.bf16.msra.mxu0 0
      %768 = vmatprep.subr.bf16.mxu0 0
      %769 = vmatpush1.bf16.msra.mxu0 0
      %770 = vmatprep.subr.bf16.mxu0 0
      %771 = vmatpush1.bf16.msra.mxu0 0
      %772 = vmatprep.subr.bf16.mxu0 0
      %773 = vmatpush1.bf16.msra.mxu0 0
      %774 = vmatprep.subr.bf16.mxu0 0
      %775 = vmatpush1.bf16.msra.mxu0 0
      %776 = vmatprep.subr.bf16.mxu0 0
      %777 = vmatpush1.bf16.msra.mxu0 0
      %778 = vmatprep.subr.bf16.mxu0 0
      %779 = vmatpush1.bf16.msra.mxu0 0
      %780 = vmatprep.subr.bf16.mxu0 0
      %781 = vmatpush1.bf16.msra.mxu0 0
      %782 = vmatprep.subr.bf16.mxu0 0
      %783 = vmatpush1.bf16.msra.mxu0 0
      %784 = vmatprep.subr.bf16.mxu0 0
      %785 = vmatpush1.bf16.msra.mxu0 0
      %786 = vmatprep.mubr.bf16.mxu0 0
      %787 = vmatmul.mubr.bf16.gmra.mrb[0].mxu0 %v752
      %v788 = vpop.f32.mrb[0].mxu0
      %v789 = vadd.f32 0.0, %v788
      %v790 = vpop.f32.mrb[0].mxu0
      %v791 = vpop.f32.mrb[0].mxu0
      %v792 = vadd.f32 0.0, %v791
      %v793 = vpop.f32.mrb[0].mxu0
      %794 = vdwg.mxu0
      %v795 = vadd.f32 %v737, %v789
      %v796 = vadd.f32 %v738, %v792
      %v797 = vxor.u32 %v795, 2147483648
      %v798 = vxor.u32 %v796, 2147483648
      %v799 = vmul.f32 %v797, 1.442695
      %v800 = vpow.pop %v799
      %v801 = vmul.f32 %v798, 1.442695
      %v802 = vpow.pop %v801
      %v803 = vadd.f32 %v800, 1.0
      %v804 = vadd.f32 %v802, 1.0
      %v805 = vrcp.pop %v803
      %v806 = vmul.f32 1.0, %v805
      %v807 = vrcp.pop %v804
      %v808 = vmul.f32 1.0, %v807
      %v809 = vmul.f32 %v806, %v422
      %v810 = vmul.f32 %v808, %v423
      %v811 = vpack.c.bf16 %v810, %v809
      %v816 = vunpack.c.l.b16 %v130
      %v817 = vunpack.c.l.b16 %v131
      %v818 = vunpack.c.l.b16 %v132
      %v819 = vunpack.c.l.b16 %v133
      %v820 = vpack.c.b16 %v817, %v816
      %v821 = vpack.c.b16 %v819, %v818
      %v825 = vsel %vm183, %v811, 0
      %827 = vmatprep.subr.bf16.mxu0 0
      %828 = vmatpush1.bf16.msra.mxu0 %v820
      %829 = vmatprep.subr.bf16.mxu0 0
      %830 = vmatpush1.bf16.msra.mxu0 %v821
      %831 = vmatprep.subr.bf16.mxu0 0
      %832 = vmatpush1.bf16.msra.mxu0 0
      %833 = vmatprep.subr.bf16.mxu0 0
      %834 = vmatpush1.bf16.msra.mxu0 0
      %835 = vmatprep.subr.bf16.mxu0 0
      %836 = vmatpush1.bf16.msra.mxu0 0
      %837 = vmatprep.subr.bf16.mxu0 0
      %838 = vmatpush1.bf16.msra.mxu0 0
      %839 = vmatprep.subr.bf16.mxu0 0
      %840 = vmatpush1.bf16.msra.mxu0 0
      %841 = vmatprep.subr.bf16.mxu0 0
      %842 = vmatpush1.bf16.msra.mxu0 0
      %843 = vmatprep.subr.bf16.mxu0 0
      %844 = vmatpush1.bf16.msra.mxu0 0
      %845 = vmatprep.subr.bf16.mxu0 0
      %846 = vmatpush1.bf16.msra.mxu0 0
      %847 = vmatprep.subr.bf16.mxu0 0
      %848 = vmatpush1.bf16.msra.mxu0 0
      %849 = vmatprep.subr.bf16.mxu0 0
      %850 = vmatpush1.bf16.msra.mxu0 0
      %851 = vmatprep.subr.bf16.mxu0 0
      %852 = vmatpush1.bf16.msra.mxu0 0
      %853 = vmatprep.subr.bf16.mxu0 0
      %854 = vmatpush1.bf16.msra.mxu0 0
      %855 = vmatprep.subr.bf16.mxu0 0
      %856 = vmatpush1.bf16.msra.mxu0 0
      %857 = vmatprep.subr.bf16.mxu0 0
      %858 = vmatpush1.bf16.msra.mxu0 0
      %859 = vmatprep.mubr.bf16.mxu0 0
      %860 = vmatmul.mubr.bf16.gmra.mrb[0].mxu0 %v825
      %v861 = vpop.f32.mrb[0].mxu0
      %v862 = vadd.f32 0.0, %v861
      %v863 = vpop.f32.mrb[0].mxu0
      %v864 = vpop.f32.mrb[0].mxu0
      %v865 = vadd.f32 0.0, %v864
      %v866 = vpop.f32.mrb[0].mxu0
      %867 = vdwg.mxu0
      %870 = vrot.lane.b32.xlu0 %v862, 64
      %v871 = vpop.permute.xlu0 %870
      %872 = vrot.lane.b32.xlu0 %v865, 64
      %v873 = vpop.permute.xlu0 %872
      %v876 = vadd.f32 %v737, %v871
      %v877 = vadd.f32 %v738, %v873
      %v878 = vtanh.pop %v876
      %v879 = vtanh.pop %v877
      %v880 = vsub.f32 1.0, %v806
      %v881 = vsub.f32 1.0, %v808
      %884 = vrot.lane.b32.xlu0 %v422, 32
      %v885 = vpop.permute.xlu0 %884
      %886 = vrot.lane.b32.xlu0 %v423, 32
      %v887 = vpop.permute.xlu0 %886
      %v890 = vmul.f32 %v880, %v885
      %v891 = vmul.f32 %v881, %v887
      %894 = vrot.lane.b32.xlu0 %v878, 96
      %v895 = vpop.permute.xlu0 %894
      %896 = vrot.lane.b32.xlu0 %v879, 96
      %v897 = vpop.permute.xlu0 %896
      %v900 = vmul.f32 %v806, %v895
      %v901 = vmul.f32 %v808, %v897
      %v902 = vadd.f32 %v890, %v900
      %v903 = vadd.f32 %v891, %v901
      %906 = vrot.lane.b32.xlu0 %v902, 96
      %v907 = vpop.permute.xlu0 %906
      %908 = vrot.lane.b32.xlu0 %v903, 96
      %v909 = vpop.permute.xlu0 %908
    $region82: #{tpu_custom_call.1} parent=1 // loop_footer
      %s421 = sadd.s32 1, %s417
    $region83: #{tpu_custom_call.1} parent=1 // loop_footer_branch
      %416 = sbr.rel target = $region79
    $region84: #{tpu_custom_call.1} parent=1 // loop_exit
      _
    %v912 = vpack.c.bf16 %v423, %v422
    %v915 = vunpack.c.l.b16 %v118
    %v916 = vunpack.c.l.b16 %v119
    %v917 = vpack.c.b16 %v916, %v915
    %v920 = vunpack.c.l.b16 %v138
    %v921 = vunpack.c.l.b16 %v139
    %v922 = vpack.c.b16 %v921, %v920
    %vm924 = vcmask 130048
    %v926 = vsel %vm924, %v917, 0
    %928 = vmatprep.subr.bf16.mxu0 0
    %929 = vmatpush1.bf16.msra.mxu0 %v922
    %930 = vmatprep.subr.bf16.mxu0 0
    %931 = vmatpush1.bf16.msra.mxu0 0
    %932 = vmatprep.subr.bf16.mxu0 0
    %933 = vmatpush1.bf16.msra.mxu0 0
    %934 = vmatprep.subr.bf16.mxu0 0
    %935 = vmatpush1.bf16.msra.mxu0 0
    %936 = vmatprep.subr.bf16.mxu0 0
    %937 = vmatpush1.bf16.msra.mxu0 0
    %938 = vmatprep.subr.bf16.mxu0 0
    %939 = vmatpush1.bf16.msra.mxu0 0
    %940 = vmatprep.subr.bf16.mxu0 0
    %941 = vmatpush1.bf16.msra.mxu0 0
    %942 = vmatprep.subr.bf16.mxu0 0
    %943 = vmatpush1.bf16.msra.mxu0 0
    %944 = vmatprep.subr.bf16.mxu0 0
    %945 = vmatpush1.bf16.msra.mxu0 0
    %946 = vmatprep.subr.bf16.mxu0 0
    %947 = vmatpush1.bf16.msra.mxu0 0
    %948 = vmatprep.subr.bf16.mxu0 0
    %949 = vmatpush1.bf16.msra.mxu0 0
    %950 = vmatprep.subr.bf16.mxu0 0
    %951 = vmatpush1.bf16.msra.mxu0 0
    %952 = vmatprep.subr.bf16.mxu0 0
    %953 = vmatpush1.bf16.msra.mxu0 0
    %954 = vmatprep.subr.bf16.mxu0 0
    %955 = vmatpush1.bf16.msra.mxu0 0
    %956 = vmatprep.subr.bf16.mxu0 0
    %957 = vmatpush1.bf16.msra.mxu0 0
    %958 = vmatprep.subr.bf16.mxu0 0
    %959 = vmatpush1.bf16.msra.mxu0 0
    %960 = vmatprep.mubr.bf16.mxu0 0
    %961 = vmatmul.mubr.bf16.gmra.mrb[0].mxu0 %v926
    %v962 = vpop.f32.mrb[0].mxu0
    %v963 = vadd.f32 0.0, %v962
    %v964 = vpop.f32.mrb[0].mxu0
    %v965 = vpop.f32.mrb[0].mxu0
    %v966 = vadd.f32 0.0, %v965
    %v967 = vpop.f32.mrb[0].mxu0
    %968 = vdwg.mxu0
    %v973 = vunpack.c.l.b16 %v134
    %v974 = vunpack.c.l.b16 %v135
    %v975 = vunpack.c.l.b16 %v136
    %v976 = vunpack.c.l.b16 %v137
    %v977 = vpack.c.b16 %v974, %v973
    %v978 = vpack.c.b16 %v976, %v975
    %v982 = vsel %vm183, %v912, 0
    %984 = vmatprep.subr.bf16.mxu0 0
    %985 = vmatpush1.bf16.msra.mxu0 %v977
    %986 = vmatprep.subr.bf16.mxu0 0
    %987 = vmatpush1.bf16.msra.mxu0 %v978
    %988 = vmatprep.subr.bf16.mxu0 0
    %989 = vmatpush1.bf16.msra.mxu0 0
    %990 = vmatprep.subr.bf16.mxu0 0
    %991 = vmatpush1.bf16.msra.mxu0 0
    %992 = vmatprep.subr.bf16.mxu0 0
    %993 = vmatpush1.bf16.msra.mxu0 0
    %994 = vmatprep.subr.bf16.mxu0 0
    %995 = vmatpush1.bf16.msra.mxu0 0
    %996 = vmatprep.subr.bf16.mxu0 0
    %997 = vmatpush1.bf16.msra.mxu0 0
    %998 = vmatprep.subr.bf16.mxu0 0
    %999 = vmatpush1.bf16.msra.mxu0 0
    %1000 = vmatprep.subr.bf16.mxu0 0
    %1001 = vmatpush1.bf16.msra.mxu0 0
    %1002 = vmatprep.subr.bf16.mxu0 0
    %1003 = vmatpush1.bf16.msra.mxu0 0
    %1004 = vmatprep.subr.bf16.mxu0 0
    %1005 = vmatpush1.bf16.msra.mxu0 0
    %1006 = vmatprep.subr.bf16.mxu0 0
    %1007 = vmatpush1.bf16.msra.mxu0 0
    %1008 = vmatprep.subr.bf16.mxu0 0
    %1009 = vmatpush1.bf16.msra.mxu0 0
    %1010 = vmatprep.subr.bf16.mxu0 0
    %1011 = vmatpush1.bf16.msra.mxu0 0
    %1012 = vmatprep.subr.bf16.mxu0 0
    %1013 = vmatpush1.bf16.msra.mxu0 0
    %1014 = vmatprep.subr.bf16.mxu0 0
    %1015 = vmatpush1.bf16.msra.mxu0 0
    %1016 = vmatprep.mubr.bf16.mxu0 0
    %1017 = vmatmul.mubr.bf16.gmra.mrb[0].mxu0 %v982
    %v1018 = vpop.f32.mrb[0].mxu0
    %v1019 = vadd.f32 %v963, %v1018
    %v1020 = vpop.f32.mrb[0].mxu0
    %v1021 = vpop.f32.mrb[0].mxu0
    %v1022 = vadd.f32 %v966, %v1021
    %v1023 = vpop.f32.mrb[0].mxu0
    %1024 = vdwg.mxu0
    %v1026 = vlaneseq
    %v1027 = vshrl.u32 %v1026, 7
    %v1028 = vsub.s32 0, %v1027
    %v1029 = vrot.slane %v140, %v1028
    %v1031 = vadd.f32 %v1019, %v1029
    %v1032 = vadd.f32 %v1022, %v1029
    %v1033 = vtanh.pop %v1031
    %v1034 = vtanh.pop %v1032
    %v1035 = vpack.c.bf16 %v1034, %v1033
    %v1037 = vsel %vm924, %v141, 0
    %1039 = vmatprep.subr.bf16.mxu0 0
    %1040 = vmatpush1.bf16.msra.mxu0 %v1035
    %1041 = vmatprep.subr.bf16.mxu0 0
    %1042 = vmatpush1.bf16.msra.mxu0 0
    %1043 = vmatprep.subr.bf16.mxu0 0
    %1044 = vmatpush1.bf16.msra.mxu0 0
    %1045 = vmatprep.subr.bf16.mxu0 0
    %1046 = vmatpush1.bf16.msra.mxu0 0
    %1047 = vmatprep.subr.bf16.mxu0 0
    %1048 = vmatpush1.bf16.msra.mxu0 0
    %1049 = vmatprep.subr.bf16.mxu0 0
    %1050 = vmatpush1.bf16.msra.mxu0 0
    %1051 = vmatprep.subr.bf16.mxu0 0
    %1052 = vmatpush1.bf16.msra.mxu0 0
    %1053 = vmatprep.subr.bf16.mxu0 0
    %1054 = vmatpush1.bf16.msra.mxu0 0
    %1055 = vmatprep.subr.bf16.mxu0 0
    %1056 = vmatpush1.bf16.msra.mxu0 0
    %1057 = vmatprep.subr.bf16.mxu0 0
    %1058 = vmatpush1.bf16.msra.mxu0 0
    %1059 = vmatprep.subr.bf16.mxu0 0
    %1060 = vmatpush1.bf16.msra.mxu0 0
    %1061 = vmatprep.subr.bf16.mxu0 0
    %1062 = vmatpush1.bf16.msra.mxu0 0
    %1063 = vmatprep.subr.bf16.mxu0 0
    %1064 = vmatpush1.bf16.msra.mxu0 0
    %1065 = vmatprep.subr.bf16.mxu0 0
    %1066 = vmatpush1.bf16.msra.mxu0 0
    %1067 = vmatprep.subr.bf16.mxu0 0
    %1068 = vmatpush1.bf16.msra.mxu0 0
    %1069 = vmatprep.subr.bf16.mxu0 0
    %1070 = vmatpush1.bf16.msra.mxu0 0
    %1071 = vmatprep.mubr.bf16.mxu0 0
    %1072 = vmatmul.mubr.bf16.gmra.mrb[0].mxu0 %v1037
    %v1073 = vpop.f32.mrb[0].mxu0
    %v1074 = vadd.f32 0.0, %v1073
    %v1075 = vpop.f32.mrb[0].mxu0
    %v1076 = vpop.f32.mrb[0].mxu0
    %v1077 = vpop.f32.mrb[0].mxu0
    %1078 = vdwg.mxu0
    %v1080 = vlaneseq
    %v1081 = vshrl.u32 %v1080, 7
    %v1082 = vsub.s32 0, %v1081
    %v1083 = vrot.slane %v142, %v1082
    %v1085 = vmul.f32 %v1074, %v1083
    %vm1086 = vcmask 254976
    %v1087 = vsel %vm1086, %v1085, 0.0
    %1088 = vadd.xlane.f32.xlu0 %v1087
    %v1089 = vpop.xlane.xlu0 %1088
    %vm1090 = vcmask 1024
    %1091 = vst.msk [vmem:[%s14] sm:$0x3] %vm1090, %v1089
    // Predicated region
    $region85: #{tpu_custom_call.1} parent=1 // pred_check
      _
    $region86: #{tpu_custom_call.1} parent=1 // pred_check_branch
      %1093 = sbr.rel (0) target = $region88
    $region87: #{tpu_custom_call.1} parent=1 // pred_region
      _
    $region88: #{tpu_custom_call.1} parent=1 // pred_fallthru
      _
    // Predicated region
    $region89: #{tpu_custom_call.1} parent=1 // pred_check
      _
    $region90: #{tpu_custom_call.1} parent=1 // pred_check_branch
      %1095 = sbr.rel (0) target = $region92
    $region91: #{tpu_custom_call.1} parent=1 // pred_region
      _
    $region92: #{tpu_custom_call.1} parent=1 // pred_fallthru
      _
    %1096 = vsyncpa [#allocation3], 1
    %1097 = vsyncpa [#allocation5], 1
    %1098 = vsyncpa [#allocation8], 1

</llo_original>
